<compile_context>
chip_gen: v6e
topology: v6e:2x2x1
jax: 0.10.0
libtpu: 0.0.40
codegen_flags: <defaults>
</compile_context>

<pallas_src>
import functools

import jax
import jax.numpy as jnp
import numpy as np
from jax import lax
from jax.experimental import pallas as pl
from jax.experimental.pallas import tpu as pltpu


def _make_stem_kernel(TH, W, Cin, Cout):
    """Build the conv3x3 + folded-BN + SiLU kernel for a TH-row output block."""
    K = 9 * Cin

    def kernel(x_ref, w_ref, scale_ref, shift_ref, o_ref, p_ref):
        # x_ref:     (H+2, W+2, Cin)  bf16  whole halo-padded NHWC image (batch squeezed)
        # w_ref:     (9*Cin, Cout)    bf16  conv weights, feature order (kh, kw, cin)
        # scale_ref: (1, Cout)        f32   folded BN scale
        # shift_ref: (1, Cout)        f32   folded BN shift (includes conv bias)
        # o_ref:     (TH, W, Cout)    bf16  output rows [h*TH, (h+1)*TH)
        # p_ref:     (TH, W, 9*Cin)   bf16  VMEM scratch: in-kernel im2col staging
        r0 = pl.program_id(1) * TH  # first padded input row needed by this block

        # ---- in-kernel im2col: 9 static-sliced tap copies into VMEM scratch ----
        # p[hh, w, (kh*3+kw)*Cin + cin] = x_pad[r0+hh+kh, w+kw, cin]
        for kh in range(3):
            for kw in range(3):
                j = kh * 3 + kw
                p_ref[:, :, pl.ds(j * Cin, Cin)] = (
                    x_ref[pl.ds(r0 + kh, TH), pl.ds(kw, W), :]
                )

        # ---- one K=9*Cin MXU GEMM per output row + fused BN/SiLU epilogue ----
        def row(hh, carry):
            acc = jnp.dot(p_ref[hh], w_ref[...],
                          preferred_element_type=jnp.float32)      # (W, Cout) f32
            y = acc * scale_ref[...] + shift_ref[...]
            # SiLU; sigmoid lowers to the EUP logistic (separate slot from MXU/VPU).
            o_ref[hh] = (y * jax.nn.sigmoid(y)).astype(o_ref.dtype)
            return carry

        lax.fori_loop(0, TH, row, 0)

    return kernel


def _pick_row_block(H, W, N, target_rows=2048, min_steps=4):
    """Pick TH | H so the per-step GEMM has ~target_rows rows but the grid keeps
    at least `min_steps` balanced parallel steps (v7x has 2 TensorCores)."""
    divisors = [d for d in range(1, H + 1) if H % d == 0]
    fitting = [d for d in divisors if d * W <= target_rows] or [1]
    th = max(fitting)
    while N * (H // th) < min_steps:
        smaller = [d for d in fitting if d < th]
        if not smaller:
            break
        th = max(smaller)
    return th


def _buffer_bytes(shape, dtype):
    """Rough padded VMEM footprint of one pipeline buffer for `shape`."""
    itemsize = jnp.dtype(dtype).itemsize
    sublane = {4: 8, 2: 16, 1: 32}.get(itemsize, 8)
    dims = [int(d) for d in shape]
    while len(dims) < 2:
        dims.insert(0, 1)
    lane_p = -(-dims[-1] // 128) * 128
    sub_p = -(-dims[-2] // sublane) * sublane
    outer = 1
    for d in dims[:-2]:
        outer *= d
    return outer * sub_p * lane_p * itemsize


def extract_features_pallas(x_nchw, w, bias, bn_gamma, bn_beta, bn_mean, bn_var,
                            eps=1e-5, row_block=None, channels_last_output=False):
    """Pallas implementation of net.extract_features(x).

    x_nchw: (N, Cin, H, W) float32   (PyTorch NCHW convention)
    w:      (Cout, Cin, 3, 3)        (PyTorch conv weight convention)
    Returns (N, Cout, H, W) by default; pass channels_last_output=True to get
    the kernel-native (N, H, W, Cout) bf16 output with zero post-kernel passes.
    """
    N, Cin, H, W = x_nchw.shape
    Cout = w.shape[0]
    K = 9 * Cin

    TH = _pick_row_block(H, W, N) if row_block is None else row_block
    assert H % TH == 0, "row_block must divide H"
    grid = (N, H // TH)

    # ---- one-time input glue (≈1x input bytes; no im2col patch matrix in HBM) ----
    x_nhwc = jnp.transpose(x_nchw, (0, 2, 3, 1))                       # (N, H, W, Cin)
    x_pad = jnp.pad(x_nhwc, ((0, 0), (1, 1), (1, 1), (0, 0))).astype(jnp.bfloat16)

    # Weights: (Cout, Cin, 3, 3) -> (kh, kw, cin, cout) -> (9*Cin, Cout), bf16
    # (feature order matches the in-kernel tap staging order).
    w_mat = jnp.transpose(w, (2, 3, 1, 0)).reshape(K, Cout).astype(jnp.bfloat16)

    # Folded BatchNorm (+ conv bias): y = conv*scale + shift, then SiLU.
    scale = (bn_gamma / jnp.sqrt(bn_var + eps)).astype(jnp.float32)
    shift = (bn_beta - bn_mean * scale + bias * scale).astype(jnp.float32)
    scale2 = scale.reshape(1, Cout)
    shift2 = shift.reshape(1, Cout)

    # ---- explicit VMEM budget (v7x: 64 MiB physical / 32 MiB scoped default) ----
    est = (2 * _buffer_bytes((H + 2, W + 2, Cin), jnp.bfloat16)   # image block, 2 bufs
           + 2 * _buffer_bytes((K, Cout), jnp.bfloat16)           # weights
           + 4 * _buffer_bytes((1, Cout), jnp.float32)            # scale + shift
           + 2 * _buffer_bytes((TH, W, Cout), jnp.bfloat16)       # output block
           + _buffer_bytes((TH, W, K), jnp.bfloat16))             # im2col scratch
    vmem_limit = int(min(max(4 * est, 16 * 1024 * 1024), 64 * 1024 * 1024))

    kernel = _make_stem_kernel(TH, W, Cin, Cout)

    out_nhwc = pl.pallas_call(
        kernel,
        out_shape=jax.ShapeDtypeStruct((N, H, W, Cout), jnp.bfloat16),
        grid_spec=pltpu.PrefetchScalarGridSpec(
            num_scalar_prefetch=0,
            grid=grid,
            in_specs=[
                # Whole padded image per batch element; block index depends only
                # on n, so it is DMA'd once per n and reused across all h steps.
                pl.BlockSpec((None, H + 2, W + 2, Cin), lambda n, h: (n, 0, 0, 0)),
                pl.BlockSpec((K, Cout), lambda n, h: (0, 0)),
                pl.BlockSpec((1, Cout), lambda n, h: (0, 0)),
                pl.BlockSpec((1, Cout), lambda n, h: (0, 0)),
            ],
            out_specs=pl.BlockSpec((None, TH, W, Cout), lambda n, h: (n, h, 0, 0)),
            scratch_shapes=[pltpu.VMEM((TH, W, K), jnp.bfloat16)],
        ),
        compiler_params=pltpu.CompilerParams(
            dimension_semantics=("parallel", "parallel"),
            vmem_limit_bytes=vmem_limit),
    )(x_pad, w_mat, scale2, shift2)

    if channels_last_output:
        return out_nhwc                       # zero post-kernel passes (review item 4)
    # Single fused pass for PyTorch NCHW callers (no slice: output is unpadded).
    return jnp.transpose(out_nhwc, (0, 3, 1, 2))


def extract_features_reference(x_nchw, w, bias, bn_gamma, bn_beta, bn_mean, bn_var,
                               eps=1e-5):
    """Pure-JAX reference (same semantics as the PyTorch stem), full f32."""
    y = lax.conv_general_dilated(
        x_nchw, w, window_strides=(1, 1), padding=((1, 1), (1, 1)),
        dimension_numbers=("NCHW", "OIHW", "NCHW"))
    y = y + bias[None, :, None, None]
    scale = bn_gamma / jnp.sqrt(bn_var + eps)
    y = y * scale[None, :, None, None] + (bn_beta - bn_mean * scale)[None, :, None, None]
    return y * jax.nn.sigmoid(y)


if __name__ == "__main__":
    key = jax.random.PRNGKey(0)
    k_x, k_w, k_b, k_m, k_v = jax.random.split(key, 5)

    N, Cin, H, W = 2, 4, 16, 16
    Cout = 32

    x = jax.random.normal(k_x, (N, Cin, H, W), dtype=jnp.float32)
    w = jax.random.normal(k_w, (Cout, Cin, 3, 3), dtype=jnp.float32) * 0.1
    bias = jax.random.normal(k_b, (Cout,), dtype=jnp.float32) * 0.01
    bn_gamma = jnp.ones((Cout,), dtype=jnp.float32)
    bn_beta = jnp.zeros((Cout,), dtype=jnp.float32)
    bn_mean = jax.random.normal(k_m, (Cout,), dtype=jnp.float32) * 0.05
    bn_var = jnp.abs(jax.random.normal(k_v, (Cout,), dtype=jnp.float32)) + 0.5

    out = extract_features_pallas(x, w, bias, bn_gamma, bn_beta, bn_mean, bn_var)
    out = jax.block_until_ready(out)

    ref = extract_features_reference(x, w, bias, bn_gamma, bn_beta, bn_mean, bn_var)
    # bf16 matmul operands + bf16 output store (f32 accumulate/epilogue) ->
    # compare at bf16-appropriate tolerance.
    np.testing.assert_allclose(np.asarray(out.astype(jnp.float32)),
                               np.asarray(ref), rtol=2e-2, atol=2e-2)

    print("KERNEL_OK")
</pallas_src>

<mosaic_0001>
module attributes {stable_mosaic.version = 11 : i64} {
  func.func @kernel(%arg0: i32, %arg1: i32, %arg2: memref<1x18x18x4xbf16, #tpu.memory_space<vmem>>, %arg3: memref<36x32xbf16, #tpu.memory_space<vmem>>, %arg4: memref<1x32xf32, #tpu.memory_space<vmem>>, %arg5: memref<1x32xf32, #tpu.memory_space<vmem>>, %arg6: memref<1x8x16x32xbf16, #tpu.memory_space<vmem>>, %arg7: memref<8x16x36xbf16, #tpu.memory_space<vmem>>) attributes {dimension_semantics = [#tpu.dimension_semantics<parallel>, #tpu.dimension_semantics<parallel>], iteration_bounds = array<i64: 2, 2>, scalar_prefetch = 0 : i64, scratch_operands = 1 : i64, tpu.core_type = #tpu.core_type<tc>, window_params = [{transform_indices = @transform_0, window_bounds = array<i64: 1, 18, 18, 4>}, {pipeline_mode = #tpu.pipeline_mode<synchronous>, transform_indices = @transform_1, window_bounds = array<i64: 36, 32>}, {pipeline_mode = #tpu.pipeline_mode<synchronous>, transform_indices = @transform_2, window_bounds = array<i64: 1, 32>}, {pipeline_mode = #tpu.pipeline_mode<synchronous>, transform_indices = @transform_3, window_bounds = array<i64: 1, 32>}, {transform_indices = @transform_4, window_bounds = array<i64: 1, 8, 16, 32>}]} {
    %c8_i32 = arith.constant 8 : i32
    %0 = arith.muli %arg1, %c8_i32 : i32
    %c0_i32 = arith.constant 0 : i32
    %1 = arith.addi %0, %c0_i32 : i32
    %c0 = arith.constant 0 : index
    %2 = arith.index_cast %1 : i32 to index
    %c0_0 = arith.constant 0 : index
    %c0_1 = arith.constant 0 : index
    %3 = vector.load %arg2[%c0, %2, %c0_0, %c0_1] : memref<1x18x18x4xbf16, #tpu.memory_space<vmem>>, vector<1x8x16x4xbf16>
    %4 = vector.shape_cast %3 : vector<1x8x16x4xbf16> to vector<8x16x4xbf16>
    %c0_2 = arith.constant 0 : index
    %c0_3 = arith.constant 0 : index
    %c0_4 = arith.constant 0 : index
    %5 = vector.load %arg7[%c0_2, %c0_3, %c0_4] : memref<8x16x36xbf16, #tpu.memory_space<vmem>>, vector<8x16x4xbf16>
    tpu.vector_store %arg7[%c0_2, %c0_3, %c0_4], %4 {strides = array<i32>} : memref<8x16x36xbf16, #tpu.memory_space<vmem>>, vector<8x16x4xbf16>,
    %c0_i32_5 = arith.constant 0 : i32
    %6 = arith.addi %0, %c0_i32_5 : i32
    %c0_6 = arith.constant 0 : index
    %7 = arith.index_cast %6 : i32 to index
    %c1 = arith.constant 1 : index
    %c0_7 = arith.constant 0 : index
    %8 = vector.load %arg2[%c0_6, %7, %c1, %c0_7] : memref<1x18x18x4xbf16, #tpu.memory_space<vmem>>, vector<1x8x16x4xbf16>
    %9 = vector.shape_cast %8 : vector<1x8x16x4xbf16> to vector<8x16x4xbf16>
    %c0_8 = arith.constant 0 : index
    %c0_9 = arith.constant 0 : index
    %c4 = arith.constant 4 : index
    %10 = vector.load %arg7[%c0_8, %c0_9, %c4] : memref<8x16x36xbf16, #tpu.memory_space<vmem>>, vector<8x16x4xbf16>
    tpu.vector_store %arg7[%c0_8, %c0_9, %c4], %9 {strides = array<i32>} : memref<8x16x36xbf16, #tpu.memory_space<vmem>>, vector<8x16x4xbf16>,
    %c0_i32_10 = arith.constant 0 : i32
    %11 = arith.addi %0, %c0_i32_10 : i32
    %c0_11 = arith.constant 0 : index
    %12 = arith.index_cast %11 : i32 to index
    %c2 = arith.constant 2 : index
    %c0_12 = arith.constant 0 : index
    %13 = vector.load %arg2[%c0_11, %12, %c2, %c0_12] : memref<1x18x18x4xbf16, #tpu.memory_space<vmem>>, vector<1x8x16x4xbf16>
    %14 = vector.shape_cast %13 : vector<1x8x16x4xbf16> to vector<8x16x4xbf16>
    %c0_13 = arith.constant 0 : index
    %c0_14 = arith.constant 0 : index
    %c8 = arith.constant 8 : index
    %15 = vector.load %arg7[%c0_13, %c0_14, %c8] : memref<8x16x36xbf16, #tpu.memory_space<vmem>>, vector<8x16x4xbf16>
    tpu.vector_store %arg7[%c0_13, %c0_14, %c8], %14 {strides = array<i32>} : memref<8x16x36xbf16, #tpu.memory_space<vmem>>, vector<8x16x4xbf16>,
    %c1_i32 = arith.constant 1 : i32
    %16 = arith.addi %0, %c1_i32 : i32
    %c0_15 = arith.constant 0 : index
    %17 = arith.index_cast %16 : i32 to index
    %c0_16 = arith.constant 0 : index
    %c0_17 = arith.constant 0 : index
    %18 = vector.load %arg2[%c0_15, %17, %c0_16, %c0_17] : memref<1x18x18x4xbf16, #tpu.memory_space<vmem>>, vector<1x8x16x4xbf16>
    %19 = vector.shape_cast %18 : vector<1x8x16x4xbf16> to vector<8x16x4xbf16>
    %c0_18 = arith.constant 0 : index
    %c0_19 = arith.constant 0 : index
    %c12 = arith.constant 12 : index
    %20 = vector.load %arg7[%c0_18, %c0_19, %c12] : memref<8x16x36xbf16, #tpu.memory_space<vmem>>, vector<8x16x4xbf16>
    tpu.vector_store %arg7[%c0_18, %c0_19, %c12], %19 {strides = array<i32>} : memref<8x16x36xbf16, #tpu.memory_space<vmem>>, vector<8x16x4xbf16>,
    %c1_i32_20 = arith.constant 1 : i32
    %21 = arith.addi %0, %c1_i32_20 : i32
    %c0_21 = arith.constant 0 : index
    %22 = arith.index_cast %21 : i32 to index
    %c1_22 = arith.constant 1 : index
    %c0_23 = arith.constant 0 : index
    %23 = vector.load %arg2[%c0_21, %22, %c1_22, %c0_23] : memref<1x18x18x4xbf16, #tpu.memory_space<vmem>>, vector<1x8x16x4xbf16>
    %24 = vector.shape_cast %23 : vector<1x8x16x4xbf16> to vector<8x16x4xbf16>
    %c0_24 = arith.constant 0 : index
    %c0_25 = arith.constant 0 : index
    %c16 = arith.constant 16 : index
    %25 = vector.load %arg7[%c0_24, %c0_25, %c16] : memref<8x16x36xbf16, #tpu.memory_space<vmem>>, vector<8x16x4xbf16>
    tpu.vector_store %arg7[%c0_24, %c0_25, %c16], %24 {strides = array<i32>} : memref<8x16x36xbf16, #tpu.memory_space<vmem>>, vector<8x16x4xbf16>,
    %c1_i32_26 = arith.constant 1 : i32
    %26 = arith.addi %0, %c1_i32_26 : i32
    %c0_27 = arith.constant 0 : index
    %27 = arith.index_cast %26 : i32 to index
    %c2_28 = arith.constant 2 : index
    %c0_29 = arith.constant 0 : index
    %28 = vector.load %arg2[%c0_27, %27, %c2_28, %c0_29] : memref<1x18x18x4xbf16, #tpu.memory_space<vmem>>, vector<1x8x16x4xbf16>
    %29 = vector.shape_cast %28 : vector<1x8x16x4xbf16> to vector<8x16x4xbf16>
    %c0_30 = arith.constant 0 : index
    %c0_31 = arith.constant 0 : index
    %c20 = arith.constant 20 : index
    %30 = vector.load %arg7[%c0_30, %c0_31, %c20] : memref<8x16x36xbf16, #tpu.memory_space<vmem>>, vector<8x16x4xbf16>
    tpu.vector_store %arg7[%c0_30, %c0_31, %c20], %29 {strides = array<i32>} : memref<8x16x36xbf16, #tpu.memory_space<vmem>>, vector<8x16x4xbf16>,
    %c2_i32 = arith.constant 2 : i32
    %31 = arith.addi %0, %c2_i32 : i32
    %c0_32 = arith.constant 0 : index
    %32 = arith.index_cast %31 : i32 to index
    %c0_33 = arith.constant 0 : index
    %c0_34 = arith.constant 0 : index
    %33 = vector.load %arg2[%c0_32, %32, %c0_33, %c0_34] : memref<1x18x18x4xbf16, #tpu.memory_space<vmem>>, vector<1x8x16x4xbf16>
    %34 = vector.shape_cast %33 : vector<1x8x16x4xbf16> to vector<8x16x4xbf16>
    %c0_35 = arith.constant 0 : index
    %c0_36 = arith.constant 0 : index
    %c24 = arith.constant 24 : index
    %35 = vector.load %arg7[%c0_35, %c0_36, %c24] : memref<8x16x36xbf16, #tpu.memory_space<vmem>>, vector<8x16x4xbf16>
    tpu.vector_store %arg7[%c0_35, %c0_36, %c24], %34 {strides = array<i32>} : memref<8x16x36xbf16, #tpu.memory_space<vmem>>, vector<8x16x4xbf16>,
    %c2_i32_37 = arith.constant 2 : i32
    %36 = arith.addi %0, %c2_i32_37 : i32
    %c0_38 = arith.constant 0 : index
    %37 = arith.index_cast %36 : i32 to index
    %c1_39 = arith.constant 1 : index
    %c0_40 = arith.constant 0 : index
    %38 = vector.load %arg2[%c0_38, %37, %c1_39, %c0_40] : memref<1x18x18x4xbf16, #tpu.memory_space<vmem>>, vector<1x8x16x4xbf16>
    %39 = vector.shape_cast %38 : vector<1x8x16x4xbf16> to vector<8x16x4xbf16>
    %c0_41 = arith.constant 0 : index
    %c0_42 = arith.constant 0 : index
    %c28 = arith.constant 28 : index
    %40 = vector.load %arg7[%c0_41, %c0_42, %c28] : memref<8x16x36xbf16, #tpu.memory_space<vmem>>, vector<8x16x4xbf16>
    tpu.vector_store %arg7[%c0_41, %c0_42, %c28], %39 {strides = array<i32>} : memref<8x16x36xbf16, #tpu.memory_space<vmem>>, vector<8x16x4xbf16>,
    %c2_i32_43 = arith.constant 2 : i32
    %41 = arith.addi %0, %c2_i32_43 : i32
    %c0_44 = arith.constant 0 : index
    %42 = arith.index_cast %41 : i32 to index
    %c2_45 = arith.constant 2 : index
    %c0_46 = arith.constant 0 : index
    %43 = vector.load %arg2[%c0_44, %42, %c2_45, %c0_46] : memref<1x18x18x4xbf16, #tpu.memory_space<vmem>>, vector<1x8x16x4xbf16>
    %44 = vector.shape_cast %43 : vector<1x8x16x4xbf16> to vector<8x16x4xbf16>
    %c0_47 = arith.constant 0 : index
    %c0_48 = arith.constant 0 : index
    %c32 = arith.constant 32 : index
    %45 = vector.load %arg7[%c0_47, %c0_48, %c32] : memref<8x16x36xbf16, #tpu.memory_space<vmem>>, vector<8x16x4xbf16>
    tpu.vector_store %arg7[%c0_47, %c0_48, %c32], %44 {strides = array<i32>} : memref<8x16x36xbf16, #tpu.memory_space<vmem>>, vector<8x16x4xbf16>,
    %c0_i32_49 = arith.constant 0 : i32
    %c8_i32_50 = arith.constant 8 : i32
    %46 = arith.addi %c0_i32_49, %c8_i32_50 : i32
    %c1_i32_51 = arith.constant 1 : i32
    scf.for %arg8 = %c0_i32_49 to %46 step %c1_i32_51  : i32 {
      %47 = arith.index_cast %arg8 : i32 to index
      %c0_53 = arith.constant 0 : index
      %c0_54 = arith.constant 0 : index
      %48 = vector.load %arg7[%47, %c0_53, %c0_54] : memref<8x16x36xbf16, #tpu.memory_space<vmem>>, vector<1x16x36xbf16>
      %49 = vector.shape_cast %48 : vector<1x16x36xbf16> to vector<16x36xbf16>
      %c0_55 = arith.constant 0 : index
      %c0_56 = arith.constant 0 : index
      %50 = vector.load %arg3[%c0_55, %c0_56] : memref<36x32xbf16, #tpu.memory_space<vmem>>, vector<36x32xbf16>
      %cst = arith.constant dense<0.000000e+00> : vector<16x32xf32>
      %51 = tpu.matmul %49, %50, %cst {dimension_numbers = #tpu.dot_dimension_numbers<[1], [0], [0], [1], [0, 0, 1, 1], [], []>} : vector<16x36xbf16>, vector<36x32xbf16>, vector<16x32xf32> -> vector<16x32xf32>
      %c0_57 = arith.constant 0 : index
      %c0_58 = arith.constant 0 : index
      %52 = vector.load %arg4[%c0_57, %c0_58] : memref<1x32xf32, #tpu.memory_space<vmem>>, vector<1x32xf32>
      %53 = vector.broadcast %52 : vector<1x32xf32> to vector<16x32xf32>
      %54 = arith.mulf %51, %53 : vector<16x32xf32>
      %c0_59 = arith.constant 0 : index
      %c0_60 = arith.constant 0 : index
      %55 = vector.load %arg5[%c0_59, %c0_60] : memref<1x32xf32, #tpu.memory_space<vmem>>, vector<1x32xf32>
      %56 = vector.broadcast %55 : vector<1x32xf32> to vector<16x32xf32>
      %57 = arith.addf %54, %56 : vector<16x32xf32>
      %58 = arith.negf %57 : vector<16x32xf32>
      %59 = math.exp %58 : vector<16x32xf32>
      %cst_61 = arith.constant 1.000000e+00 : f32
      %60 = vector.broadcast %cst_61 : f32 to vector<16x32xf32>
      %61 = arith.addf %60, %59 : vector<16x32xf32>
      %62 = arith.divf %60, %61 : vector<16x32xf32>
      %63 = arith.mulf %57, %62 : vector<16x32xf32>
      %64 = arith.truncf %63 : vector<16x32xf32> to vector<16x32xbf16>
      %c0_62 = arith.constant 0 : index
      %65 = arith.index_cast %arg8 : i32 to index
      %c0_63 = arith.constant 0 : index
      %c0_64 = arith.constant 0 : index
      %66 = vector.load %arg6[%c0_62, %65, %c0_63, %c0_64] : memref<1x8x16x32xbf16, #tpu.memory_space<vmem>>, vector<1x1x16x32xbf16>
      %67 = vector.shape_cast %66 : vector<1x1x16x32xbf16> to vector<16x32xbf16>
      %68 = vector.shape_cast %64 : vector<16x32xbf16> to vector<1x1x16x32xbf16>
      tpu.vector_store %arg6[%c0_62, %65, %c0_63, %c0_64], %68 {strides = array<i32>} : memref<1x8x16x32xbf16, #tpu.memory_space<vmem>>, vector<1x1x16x32xbf16>,
    }
    %c8_i32_52 = arith.constant 8 : i32
    return
  }
  func.func @transform_0(%arg0: i32, %arg1: i32) -> (i32, i32, i32, i32) {
    %c0_i32 = arith.constant 0 : i32
    %c0_i32_0 = arith.constant 0 : i32
    %c0_i32_1 = arith.constant 0 : i32
    %c0_i32_2 = arith.constant 0 : i32
    return %arg0, %c0_i32, %c0_i32_0, %c0_i32_1 : i32, i32, i32, i32
  }
  func.func @transform_1(%arg0: i32, %arg1: i32) -> (i32, i32) {
    %c0_i32 = arith.constant 0 : i32
    %c0_i32_0 = arith.constant 0 : i32
    %c0_i32_1 = arith.constant 0 : i32
    return %c0_i32, %c0_i32_0 : i32, i32
  }
  func.func @transform_2(%arg0: i32, %arg1: i32) -> (i32, i32) {
    %c0_i32 = arith.constant 0 : i32
    %c0_i32_0 = arith.constant 0 : i32
    %c0_i32_1 = arith.constant 0 : i32
    return %c0_i32, %c0_i32_0 : i32, i32
  }
  func.func @transform_3(%arg0: i32, %arg1: i32) -> (i32, i32) {
    %c0_i32 = arith.constant 0 : i32
    %c0_i32_0 = arith.constant 0 : i32
    %c0_i32_1 = arith.constant 0 : i32
    return %c0_i32, %c0_i32_0 : i32, i32
  }
  func.func @transform_4(%arg0: i32, %arg1: i32) -> (i32, i32, i32, i32) {
    %c0_i32 = arith.constant 0 : i32
    %c0_i32_0 = arith.constant 0 : i32
    %c0_i32_1 = arith.constant 0 : i32
    return %arg0, %arg1, %c0_i32, %c0_i32_0 : i32, i32, i32, i32
  }
}

</mosaic_0001>

<llo_original>
// kernel: tpu_custom_call.1
$region0: #{tpu_custom_call.1}
  #allocation0 [shape = 'u32[]', space=smem, size = 0x4, offset = 0x4, fixed_abs, tag = 'smem constant byte address 0x4 - core index']
  #allocation1 [shape = 'u32[144,128]{1,0:T(1,128)}', space=vmem, size = 0x12000, scoped, tag = 'internal scratch']
  #allocation2 [shape = 'bf16[8,16,36]{2,1,0:T(8,128)(2,1)}', space=vmem, size = 0x8000, scoped, tag = 'scratch operand']
  %s0 = inlined_call_operand.vmem [shape: bf16[2,18,18,4], index: 0, kind: input, shape index: {}]
  %s1 = inlined_call_operand.vmem [shape: bf16[36,32], index: 1, kind: input, shape index: {}]
  %s2 = inlined_call_operand.vmem [shape: f32[1,32], index: 2, kind: input, shape index: {}]
  %s3 = inlined_call_operand.vmem [shape: f32[1,32], index: 3, kind: input, shape index: {}]
  %s4 = inlined_call_operand.hbm [shape: bf16[2,16,16,32], index: 4, kind: output, shape index: {}]
  %s5 = sld [smem:[#allocation0]]
  $region56: #{tpu_custom_call.1} parent=0
    _
  %s7 = ssub.s32 1, %s5
  %s8 = scalar_select 0, %s7, %s5
  $region1: #{tpu_custom_call.1} parent=0
    #allocation3 [shape = 'u8[65536]{0}', space=vmem, size = 0x10000, scoped, tag = 'output window, operand 0']
    #allocation4 [shape = 's32[2]{0}', space=sflag, size = 0x8, scoped, tag = 'scoped memory for tpu_custom_call.1']
    %9 = vsyncpa [#allocation4], 0
    %s10 = scalar_lea.sflag [#allocation4], 1
    %11 = vsyncpa %s10, 0
    loop: start=0, step=1, limit=6
    $region2: #{tpu_custom_call.1} parent=1 // loop_pre_header
      _
    $region3: #{tpu_custom_call.1} parent=1 // loop_header
      %s13 = sphi 0, %s17
      %p14 = scmp.ge.s32.totalorder %s13, 6
      %s20 = sphi 0, %s32
      %s21 = sphi 0, %s28
      %s22 = sphi 0, %s20
      %s23 = sphi 0, %s21
      %s24 = sphi 0, %s22
      %s25 = sphi 0, %s23
      %s35 = sphi 0, %s37
      %s38 = sphi 0, %s35
      %s39 = sphi 0, %s38
      %s55 = sphi 0, %s39
      %s59 = sphi 0, %s59
      %s61 = sphi 0, %s59
      %s62 = sphi 0, %s61
      %s76 = sphi 0, %s62
      %s80 = sphi 0, %s80
      %s82 = sphi 0, %s80
      %s83 = sphi 0, %s82
      %s97 = sphi 0, %s83
      %s101 = sphi 0, %s101
      %s103 = sphi 0, %s101
      %s104 = sphi 0, %s103
      %s118 = sphi 0, %s104
      %s126 = sphi 0, %s128
      %s129 = sphi 0, %s126
      %s130 = sphi 0, %s129
      %s146 = sphi 0, %s130
    $region4: #{tpu_custom_call.1} parent=1 // loop_header_branch
      %16 = sbr.rel (%p14) target = $region8
    $region5: #{tpu_custom_call.1} parent=1 // loop_body
      %s18 = ssub.s32 %s13, 1
      %s19 = ssub.s32 %s13, 2
      %s26 = sadd.s32 1, %s21
      %p27 = scmp.ge.s32.totalorder %s26, 2
      %s28 = scalar_select %p27, 0, %s26
      %s29 = sadd.s32 1, %s20
      %s30 = scalar_select %p27, %s29, %s20
      %p31 = scmp.ge.s32.totalorder %s30, 2
      %s32 = scalar_select %p31, 0, %s30
      %s33 = ssub.s32 %s20, %s32
      %p34 = scmp.eq.s32.totalorder %s33, 0
      %s36 = sadd.s32 %s35, 1
      %s37 = scalar_select %p34, %s35, %s36
      %p40 = pneg %p34
      %p41 = scmp.eq.s32.totalorder %s13, 3
      %p42 = por %p40, %p41
      %p43 = scmp.ne.s32.totalorder %s35, %s38
      %p44 = scmp.eq.s32.totalorder %s13, 0
      %p45 = por %p43, %p44
      %p46 = scmp.ne.s32.totalorder %s35, %s38
      %p47 = scmp.eq.s32.totalorder %s18, 3
      %p48 = por %p46, %p47
      %p49 = scmp.ne.s32.totalorder %s38, %s39
      %p50 = scmp.eq.s32.totalorder %s18, 0
      %p51 = por %p49, %p50
      %p52 = scmp.ne.s32.totalorder %s38, %s39
      %p53 = scmp.eq.s32.totalorder %s19, 3
      %p54 = por %p52, %p53
      %p56 = scmp.ne.s32.totalorder %s39, %s55
      %p57 = scmp.eq.s32.totalorder %s19, 0
      %p58 = por %p56, %p57
      %s60 = sadd.s32 %s59, 1
      %p63 = scmp.eq.s32.totalorder %s13, 3
      %p64 = scmp.ne.s32.totalorder %s59, %s61
      %p65 = scmp.eq.s32.totalorder %s13, 0
      %p66 = por %p64, %p65
      %p67 = scmp.ne.s32.totalorder %s59, %s61
      %p68 = scmp.eq.s32.totalorder %s18, 3
      %p69 = por %p67, %p68
      %p70 = scmp.ne.s32.totalorder %s61, %s62
      %p71 = scmp.eq.s32.totalorder %s18, 0
      %p72 = por %p70, %p71
      %p73 = scmp.ne.s32.totalorder %s61, %s62
      %p74 = scmp.eq.s32.totalorder %s19, 3
      %p75 = por %p73, %p74
      %p77 = scmp.ne.s32.totalorder %s62, %s76
      %p78 = scmp.eq.s32.totalorder %s19, 0
      %p79 = por %p77, %p78
      %s81 = sadd.s32 %s80, 1
      %p84 = scmp.eq.s32.totalorder %s13, 3
      %p85 = scmp.ne.s32.totalorder %s80, %s82
      %p86 = scmp.eq.s32.totalorder %s13, 0
      %p87 = por %p85, %p86
      %p88 = scmp.ne.s32.totalorder %s80, %s82
      %p89 = scmp.eq.s32.totalorder %s18, 3
      %p90 = por %p88, %p89
      %p91 = scmp.ne.s32.totalorder %s82, %s83
      %p92 = scmp.eq.s32.totalorder %s18, 0
      %p93 = por %p91, %p92
      %p94 = scmp.ne.s32.totalorder %s82, %s83
      %p95 = scmp.eq.s32.totalorder %s19, 3
      %p96 = por %p94, %p95
      %p98 = scmp.ne.s32.totalorder %s83, %s97
      %p99 = scmp.eq.s32.totalorder %s19, 0
      %p100 = por %p98, %p99
      %s102 = sadd.s32 %s101, 1
      %p105 = scmp.eq.s32.totalorder %s13, 3
      %p106 = scmp.ne.s32.totalorder %s101, %s103
      %p107 = scmp.eq.s32.totalorder %s13, 0
      %p108 = por %p106, %p107
      %p109 = scmp.ne.s32.totalorder %s101, %s103
      %p110 = scmp.eq.s32.totalorder %s18, 3
      %p111 = por %p109, %p110
      %p112 = scmp.ne.s32.totalorder %s103, %s104
      %p113 = scmp.eq.s32.totalorder %s18, 0
      %p114 = por %p112, %p113
      %p115 = scmp.ne.s32.totalorder %s103, %s104
      %p116 = scmp.eq.s32.totalorder %s19, 3
      %p117 = por %p115, %p116
      %p119 = scmp.ne.s32.totalorder %s104, %s118
      %p120 = scmp.eq.s32.totalorder %s19, 0
      %p121 = por %p119, %p120
      %s122 = ssub.s32 %s20, %s32
      %s123 = ssub.s32 %s21, %s28
      %s124 = sor.u32 %s122, %s123
      %p125 = scmp.eq.s32.totalorder %s124, 0
      %s127 = sadd.s32 %s126, 1
      %s128 = scalar_select %p125, %s126, %s127
      %p131 = pneg %p125
      %p132 = scmp.eq.s32.totalorder %s13, 3
      %p133 = por %p131, %p132
      %p134 = scmp.ne.s32.totalorder %s126, %s129
      %p135 = scmp.eq.s32.totalorder %s13, 0
      %p136 = por %p134, %p135
      %p137 = scmp.ne.s32.totalorder %s126, %s129
      %p138 = scmp.eq.s32.totalorder %s18, 3
      %p139 = por %p137, %p138
      %p140 = scmp.ne.s32.totalorder %s129, %s130
      %p141 = scmp.eq.s32.totalorder %s18, 0
      %p142 = por %p140, %p141
      %p143 = scmp.ne.s32.totalorder %s129, %s130
      %p144 = scmp.eq.s32.totalorder %s19, 3
      %p145 = por %p143, %p144
      %p147 = scmp.ne.s32.totalorder %s130, %s146
      %p148 = scmp.eq.s32.totalorder %s19, 0
      %p149 = por %p147, %p148
      %p150 = scmp.le.s32.totalorder 1, %s13
      %p151 = scmp.lt.s32.totalorder %s13, 5
      %p152 = pnand %p150, %p151
      %p153 = pneg %p152
      // Predicated region
      $region9: #{tpu_custom_call.1} parent=5 // pred_check
        _
      $region10: #{tpu_custom_call.1} parent=5 // pred_check_branch
        %155 = sbr.rel (%p152) target = $region12
      $region11: #{tpu_custom_call.1} parent=5 // pred_region
        %s156 = ssub.s32 %s13, 1
        // Predicated region
        $region13: #{tpu_custom_call.1} parent=11 // pred_check
          %p157 = pneg %p72
        $region14: #{tpu_custom_call.1} parent=11 // pred_check_branch
          %159 = sbr.rel (%p157) target = $region16
        $region15: #{tpu_custom_call.1} parent=11 // pred_region
          _
        $region16: #{tpu_custom_call.1} parent=11 // pred_fallthru
          _
        // Predicated region
        $region17: #{tpu_custom_call.1} parent=11 // pred_check
          %p160 = pneg %p93
        $region18: #{tpu_custom_call.1} parent=11 // pred_check_branch
          %162 = sbr.rel (%p160) target = $region20
        $region19: #{tpu_custom_call.1} parent=11 // pred_region
          _
        $region20: #{tpu_custom_call.1} parent=11 // pred_fallthru
          _
        // Predicated region
        $region21: #{tpu_custom_call.1} parent=11 // pred_check
          %p163 = pneg %p114
        $region22: #{tpu_custom_call.1} parent=11 // pred_check_branch
          %165 = sbr.rel (%p163) target = $region24
        $region23: #{tpu_custom_call.1} parent=11 // pred_region
          _
        $region24: #{tpu_custom_call.1} parent=11 // pred_fallthru
          _
      $region12: #{tpu_custom_call.1} parent=5 // pred_fallthru
        _
      %p166 = scmp.lt.s32.totalorder %s13, 4
      // Predicated region
      $region25: #{tpu_custom_call.1} parent=5 // pred_check
        %p167 = pneg %p166
      $region26: #{tpu_custom_call.1} parent=5 // pred_check_branch
        %169 = sbr.rel (%p167) target = $region28
      $region27: #{tpu_custom_call.1} parent=5 // pred_region
        // Predicated region
        $region29: #{tpu_custom_call.1} parent=27 // pred_check
          %p170 = pneg %p45
        $region30: #{tpu_custom_call.1} parent=27 // pred_check_branch
          %172 = sbr.rel (%p170) target = $region32
        $region31: #{tpu_custom_call.1} parent=27 // pred_region
          %p173 = scmp.lt.s32.totalorder %s20, 1
          %s174 = scalar_select %p173, %s20, 1
          %s175 = smul.addr %s174, 54
          %s176 = smul.addr %s175, 4
          %s177 = scalar_lea.vmem %s0, %s176
        $region32: #{tpu_custom_call.1} parent=27 // pred_fallthru
          _
      $region28: #{tpu_custom_call.1} parent=5 // pred_fallthru
        _
      %p178 = scmp.le.s32.totalorder 1, %s13
      %p179 = scmp.lt.s32.totalorder %s13, 5
      %p180 = pnand %p178, %p179
      %p181 = pneg %p180
      // Predicated region
      $region33: #{tpu_custom_call.1} parent=5 // pred_check
        _
      $region34: #{tpu_custom_call.1} parent=5 // pred_check_branch
        %183 = sbr.rel (%p180) target = $region36
      $region35: #{tpu_custom_call.1} parent=5 // pred_region
        %s184 = ssub.s32 %s13, 1
        %p185 = scmp.lt.s32.totalorder %s22, 1
        %s186 = scalar_select %p185, %s22, 1
        %s187 = smul.addr %s186, 54
        %s188 = smul.addr %s187, 4
        %s189 = scalar_lea.vmem %s0, %s188
        %p190 = pneg %p51
        %p191 = pneg %p48
        %p192 = pneg %p72
        %p193 = pneg %p69
        %p194 = pneg %p93
        %p195 = pneg %p90
        %p196 = pneg %p114
        %p197 = pneg %p111
        %p198 = pneg %p142
        %p199 = pneg %p139
        %s200 = sand.u32 %s129, 1
        %s201 = scalar_lea.sflag [#allocation4], %s200
        %s202 = sand.u32 %s129, 1
        %s203 = smul.addr %s202, 64
        %s204 = scalar_lea.vmem [#allocation3], %s203
        %p205 = scmp.lt.s32.totalorder %s22, 1
        %s206 = scalar_select %p205, %s22, 1
        %s207 = smul.addr %s206, 54
        %s208 = smul.addr %s207, 4
        %s209 = scalar_lea.vmem %s0, %s208
        %s210 = smul.u32 8, %s23
        %s212 = smul.u32 %s23, 8
        %s213 = smul.u32 %s212, 3
        %s214 = smul.addr %s213, 4
        %s215 = scalar_lea.vmem %s209, %s214
        %v216 = vld [vmem:[%s215] sm:$0xf]
        %v217 = vld [vmem:[%s215 + $0x4] sm:$0xf]
        %v218 = vld [vmem:[%s215 + $0xc] sm:$0xf]
        %v219 = vld [vmem:[%s215 + $0x10] sm:$0xf]
        %v220 = vld [vmem:[%s215 + $0x18] sm:$0xf]
        %v221 = vld [vmem:[%s215 + $0x1c] sm:$0xf]
        %v222 = vld [vmem:[%s215 + $0x24] sm:$0xf]
        %v223 = vld [vmem:[%s215 + $0x28] sm:$0xf]
        %v224 = vld [vmem:[%s215 + $0x30] sm:$0xf]
        %v225 = vld [vmem:[%s215 + $0x34] sm:$0xf]
        %v226 = vld [vmem:[%s215 + $0x3c] sm:$0xf]
        %v227 = vld [vmem:[%s215 + $0x40] sm:$0xf]
        %v228 = vld [vmem:[%s215 + $0x48] sm:$0xf]
        %v229 = vld [vmem:[%s215 + $0x4c] sm:$0xf]
        %v230 = vld [vmem:[%s215 + $0x54] sm:$0xf]
        %v231 = vld [vmem:[%s215 + $0x58] sm:$0xf]
        %vm232 = vcmask 27648
        %233 = vst.msk [vmem:[#allocation2] sm:$0xf] %vm232, %v216
        %234 = vst.msk [vmem:[#allocation2 + $0x4] sm:$0xf] %vm232, %v217
        %235 = vst.msk [vmem:[#allocation2 + $0x8] sm:$0xf] %vm232, %v218
        %236 = vst.msk [vmem:[#allocation2 + $0xc] sm:$0xf] %vm232, %v219
        %237 = vst.msk [vmem:[#allocation2 + $0x10] sm:$0xf] %vm232, %v220
        %238 = vst.msk [vmem:[#allocation2 + $0x14] sm:$0xf] %vm232, %v221
        %239 = vst.msk [vmem:[#allocation2 + $0x18] sm:$0xf] %vm232, %v222
        %240 = vst.msk [vmem:[#allocation2 + $0x1c] sm:$0xf] %vm232, %v223
        %241 = vst.msk [vmem:[#allocation2 + $0x20] sm:$0xf] %vm232, %v224
        %242 = vst.msk [vmem:[#allocation2 + $0x24] sm:$0xf] %vm232, %v225
        %243 = vst.msk [vmem:[#allocation2 + $0x28] sm:$0xf] %vm232, %v226
        %244 = vst.msk [vmem:[#allocation2 + $0x2c] sm:$0xf] %vm232, %v227
        %245 = vst.msk [vmem:[#allocation2 + $0x30] sm:$0xf] %vm232, %v228
        %246 = vst.msk [vmem:[#allocation2 + $0x34] sm:$0xf] %vm232, %v229
        %247 = vst.msk [vmem:[#allocation2 + $0x38] sm:$0xf] %vm232, %v230
        %248 = vst.msk [vmem:[#allocation2 + $0x3c] sm:$0xf] %vm232, %v231
        %v249 = vld [vmem:[%s215] sm:$0xf]
        %v250 = vld [vmem:[%s215 + $0x4] sm:$0xf]
        %v251 = vld [vmem:[%s215 + $0x8] sm:$0x1]
        %v252 = vld [vmem:[%s215 + $0xc] sm:$0xf]
        %v253 = vld [vmem:[%s215 + $0x10] sm:$0xf]
        %v254 = vld [vmem:[%s215 + $0x14] sm:$0x1]
        %v255 = vld [vmem:[%s215 + $0x18] sm:$0xf]
        %v256 = vld [vmem:[%s215 + $0x1c] sm:$0xf]
        %v257 = vld [vmem:[%s215 + $0x20] sm:$0x1]
        %v258 = vld [vmem:[%s215 + $0x24] sm:$0xf]
        %v259 = vld [vmem:[%s215 + $0x28] sm:$0xf]
        %v260 = vld [vmem:[%s215 + $0x2c] sm:$0x1]
        %v261 = vld [vmem:[%s215 + $0x30] sm:$0xf]
        %v262 = vld [vmem:[%s215 + $0x34] sm:$0xf]
        %v263 = vld [vmem:[%s215 + $0x38] sm:$0x1]
        %v264 = vld [vmem:[%s215 + $0x3c] sm:$0xf]
        %v265 = vld [vmem:[%s215 + $0x40] sm:$0xf]
        %v266 = vld [vmem:[%s215 + $0x44] sm:$0x1]
        %v267 = vld [vmem:[%s215 + $0x48] sm:$0xf]
        %v268 = vld [vmem:[%s215 + $0x4c] sm:$0xf]
        %v269 = vld [vmem:[%s215 + $0x50] sm:$0x1]
        %v270 = vld [vmem:[%s215 + $0x54] sm:$0xf]
        %v271 = vld [vmem:[%s215 + $0x58] sm:$0xf]
        %v272 = vld [vmem:[%s215 + $0x5c] sm:$0x1]
        %vm273 = vsmask.f32 3328
        %vm274 = vsmask.f32 7440
        %vm275 = vmor %vm273, %vm274
        %v277 = vshrl.u32 %v249, 16
        %v279 = vrot.slane %v277, 4
        %v280 = vshll.u32 %v249, 16
        %v282 = vrot.slane %v280, 5
        %v283 = vor.u32 %v279, %v282
        %v284 = vrot.slane %v283, 4
        %v286 = vshll.u32 %v250, 16
        %v288 = vrot.slane %v286, 5
        %v289 = vsel %vm275, %v284, %v288
        %v290 = vshrl.u32 %v250, 16
        %v292 = vrot.slane %v290, 4
        %v293 = vor.u32 %v292, %v288
        %v294 = vrot.slane %v293, 4
        %v296 = vshll.u32 %v251, 16
        %v298 = vrot.slane %v296, 5
        %v299 = vsel %vm275, %v294, %v298
        %v301 = vshrl.u32 %v252, 16
        %v303 = vrot.slane %v301, 4
        %v304 = vshll.u32 %v252, 16
        %v306 = vrot.slane %v304, 5
        %v307 = vor.u32 %v303, %v306
        %v308 = vrot.slane %v307, 4
        %v310 = vshll.u32 %v253, 16
        %v312 = vrot.slane %v310, 5
        %v313 = vsel %vm275, %v308, %v312
        %v314 = vshrl.u32 %v253, 16
        %v316 = vrot.slane %v314, 4
        %v317 = vor.u32 %v316, %v312
        %v318 = vrot.slane %v317, 4
        %v320 = vshll.u32 %v254, 16
        %v322 = vrot.slane %v320, 5
        %v323 = vsel %vm275, %v318, %v322
        %v325 = vshrl.u32 %v255, 16
        %v327 = vrot.slane %v325, 4
        %v328 = vshll.u32 %v255, 16
        %v330 = vrot.slane %v328, 5
        %v331 = vor.u32 %v327, %v330
        %v332 = vrot.slane %v331, 4
        %v334 = vshll.u32 %v256, 16
        %v336 = vrot.slane %v334, 5
        %v337 = vsel %vm275, %v332, %v336
        %v338 = vshrl.u32 %v256, 16
        %v340 = vrot.slane %v338, 4
        %v341 = vor.u32 %v340, %v336
        %v342 = vrot.slane %v341, 4
        %v344 = vshll.u32 %v257, 16
        %v346 = vrot.slane %v344, 5
        %v347 = vsel %vm275, %v342, %v346
        %v349 = vshrl.u32 %v258, 16
        %v351 = vrot.slane %v349, 4
        %v352 = vshll.u32 %v258, 16
        %v354 = vrot.slane %v352, 5
        %v355 = vor.u32 %v351, %v354
        %v356 = vrot.slane %v355, 4
        %v358 = vshll.u32 %v259, 16
        %v360 = vrot.slane %v358, 5
        %v361 = vsel %vm275, %v356, %v360
        %v362 = vshrl.u32 %v259, 16
        %v364 = vrot.slane %v362, 4
        %v365 = vor.u32 %v364, %v360
        %v366 = vrot.slane %v365, 4
        %v368 = vshll.u32 %v260, 16
        %v370 = vrot.slane %v368, 5
        %v371 = vsel %vm275, %v366, %v370
        %v373 = vshrl.u32 %v261, 16
        %v375 = vrot.slane %v373, 4
        %v376 = vshll.u32 %v261, 16
        %v378 = vrot.slane %v376, 5
        %v379 = vor.u32 %v375, %v378
        %v380 = vrot.slane %v379, 4
        %v382 = vshll.u32 %v262, 16
        %v384 = vrot.slane %v382, 5
        %v385 = vsel %vm275, %v380, %v384
        %v386 = vshrl.u32 %v262, 16
        %v388 = vrot.slane %v386, 4
        %v389 = vor.u32 %v388, %v384
        %v390 = vrot.slane %v389, 4
        %v392 = vshll.u32 %v263, 16
        %v394 = vrot.slane %v392, 5
        %v395 = vsel %vm275, %v390, %v394
        %v397 = vshrl.u32 %v264, 16
        %v399 = vrot.slane %v397, 4
        %v400 = vshll.u32 %v264, 16
        %v402 = vrot.slane %v400, 5
        %v403 = vor.u32 %v399, %v402
        %v404 = vrot.slane %v403, 4
        %v406 = vshll.u32 %v265, 16
        %v408 = vrot.slane %v406, 5
        %v409 = vsel %vm275, %v404, %v408
        %v410 = vshrl.u32 %v265, 16
        %v412 = vrot.slane %v410, 4
        %v413 = vor.u32 %v412, %v408
        %v414 = vrot.slane %v413, 4
        %v416 = vshll.u32 %v266, 16
        %v418 = vrot.slane %v416, 5
        %v419 = vsel %vm275, %v414, %v418
        %v421 = vshrl.u32 %v267, 16
        %v423 = vrot.slane %v421, 4
        %v424 = vshll.u32 %v267, 16
        %v426 = vrot.slane %v424, 5
        %v427 = vor.u32 %v423, %v426
        %v428 = vrot.slane %v427, 4
        %v430 = vshll.u32 %v268, 16
        %v432 = vrot.slane %v430, 5
        %v433 = vsel %vm275, %v428, %v432
        %v434 = vshrl.u32 %v268, 16
        %v436 = vrot.slane %v434, 4
        %v437 = vor.u32 %v436, %v432
        %v438 = vrot.slane %v437, 4
        %v440 = vshll.u32 %v269, 16
        %v442 = vrot.slane %v440, 5
        %v443 = vsel %vm275, %v438, %v442
        %v445 = vshrl.u32 %v270, 16
        %v447 = vrot.slane %v445, 4
        %v448 = vshll.u32 %v270, 16
        %v450 = vrot.slane %v448, 5
        %v451 = vor.u32 %v447, %v450
        %v452 = vrot.slane %v451, 4
        %v454 = vshll.u32 %v271, 16
        %v456 = vrot.slane %v454, 5
        %v457 = vsel %vm275, %v452, %v456
        %v458 = vshrl.u32 %v271, 16
        %v460 = vrot.slane %v458, 4
        %v461 = vor.u32 %v460, %v456
        %v462 = vrot.slane %v461, 4
        %v464 = vshll.u32 %v272, 16
        %v466 = vrot.slane %v464, 5
        %v467 = vsel %vm275, %v462, %v466
        %468 = vrot.lane.b32.xlu0 %v289, 4
        %v469 = vpop.permute.xlu0 %468
        %470 = vrot.lane.b32.xlu0 %v299, 4
        %v471 = vpop.permute.xlu0 %470
        %472 = vrot.lane.b32.xlu0 %v313, 4
        %v473 = vpop.permute.xlu0 %472
        %474 = vrot.lane.b32.xlu0 %v323, 4
        %v475 = vpop.permute.xlu0 %474
        %476 = vrot.lane.b32.xlu0 %v337, 4
        %v477 = vpop.permute.xlu0 %476
        %478 = vrot.lane.b32.xlu0 %v347, 4
        %v479 = vpop.permute.xlu0 %478
        %480 = vrot.lane.b32.xlu0 %v361, 4
        %v481 = vpop.permute.xlu0 %480
        %482 = vrot.lane.b32.xlu0 %v371, 4
        %v483 = vpop.permute.xlu0 %482
        %484 = vrot.lane.b32.xlu0 %v385, 4
        %v485 = vpop.permute.xlu0 %484
        %486 = vrot.lane.b32.xlu0 %v395, 4
        %v487 = vpop.permute.xlu0 %486
        %488 = vrot.lane.b32.xlu0 %v409, 4
        %v489 = vpop.permute.xlu0 %488
        %490 = vrot.lane.b32.xlu0 %v419, 4
        %v491 = vpop.permute.xlu0 %490
        %492 = vrot.lane.b32.xlu0 %v433, 4
        %v493 = vpop.permute.xlu0 %492
        %494 = vrot.lane.b32.xlu0 %v443, 4
        %v495 = vpop.permute.xlu0 %494
        %496 = vrot.lane.b32.xlu0 %v457, 4
        %v497 = vpop.permute.xlu0 %496
        %498 = vrot.lane.b32.xlu0 %v467, 4
        %v499 = vpop.permute.xlu0 %498
        %vm516 = vcmask 60448
        %517 = vst.msk [vmem:[#allocation2] sm:$0xf] %vm516, %v469
        %518 = vst.msk [vmem:[#allocation2 + $0x4] sm:$0xf] %vm516, %v471
        %519 = vst.msk [vmem:[#allocation2 + $0x8] sm:$0xf] %vm516, %v473
        %520 = vst.msk [vmem:[#allocation2 + $0xc] sm:$0xf] %vm516, %v475
        %521 = vst.msk [vmem:[#allocation2 + $0x10] sm:$0xf] %vm516, %v477
        %522 = vst.msk [vmem:[#allocation2 + $0x14] sm:$0xf] %vm516, %v479
        %523 = vst.msk [vmem:[#allocation2 + $0x18] sm:$0xf] %vm516, %v481
        %524 = vst.msk [vmem:[#allocation2 + $0x1c] sm:$0xf] %vm516, %v483
        %525 = vst.msk [vmem:[#allocation2 + $0x20] sm:$0xf] %vm516, %v485
        %526 = vst.msk [vmem:[#allocation2 + $0x24] sm:$0xf] %vm516, %v487
        %527 = vst.msk [vmem:[#allocation2 + $0x28] sm:$0xf] %vm516, %v489
        %528 = vst.msk [vmem:[#allocation2 + $0x2c] sm:$0xf] %vm516, %v491
        %529 = vst.msk [vmem:[#allocation2 + $0x30] sm:$0xf] %vm516, %v493
        %530 = vst.msk [vmem:[#allocation2 + $0x34] sm:$0xf] %vm516, %v495
        %531 = vst.msk [vmem:[#allocation2 + $0x38] sm:$0xf] %vm516, %v497
        %532 = vst.msk [vmem:[#allocation2 + $0x3c] sm:$0xf] %vm516, %v499
        %v533 = vld [vmem:[%s215] sm:$0xe]
        %v534 = vld [vmem:[%s215 + $0x4] sm:$0xf]
        %v535 = vld [vmem:[%s215 + $0x8] sm:$0x1]
        %v536 = vld [vmem:[%s215 + $0xc] sm:$0xe]
        %v537 = vld [vmem:[%s215 + $0x10] sm:$0xf]
        %v538 = vld [vmem:[%s215 + $0x14] sm:$0x1]
        %v539 = vld [vmem:[%s215 + $0x18] sm:$0xe]
        %v540 = vld [vmem:[%s215 + $0x1c] sm:$0xf]
        %v541 = vld [vmem:[%s215 + $0x20] sm:$0x1]
        %v542 = vld [vmem:[%s215 + $0x24] sm:$0xe]
        %v543 = vld [vmem:[%s215 + $0x28] sm:$0xf]
        %v544 = vld [vmem:[%s215 + $0x2c] sm:$0x1]
        %v545 = vld [vmem:[%s215 + $0x30] sm:$0xe]
        %v546 = vld [vmem:[%s215 + $0x34] sm:$0xf]
        %v547 = vld [vmem:[%s215 + $0x38] sm:$0x1]
        %v548 = vld [vmem:[%s215 + $0x3c] sm:$0xe]
        %v549 = vld [vmem:[%s215 + $0x40] sm:$0xf]
        %v550 = vld [vmem:[%s215 + $0x44] sm:$0x1]
        %v551 = vld [vmem:[%s215 + $0x48] sm:$0xe]
        %v552 = vld [vmem:[%s215 + $0x4c] sm:$0xf]
        %v553 = vld [vmem:[%s215 + $0x50] sm:$0x1]
        %v554 = vld [vmem:[%s215 + $0x54] sm:$0xe]
        %v555 = vld [vmem:[%s215 + $0x58] sm:$0xf]
        %v556 = vld [vmem:[%s215 + $0x5c] sm:$0x1]
        %vm581 = vcmask 1042432
        %vm582 = vcmask 1046532
        %vm583 = vmor %vm581, %vm582
        %v584 = vrot.slane %v533, 5
        %v585 = vrot.slane %v584, 4
        %v586 = vrot.slane %v534, 5
        %v587 = vsel %vm583, %v585, %v586
        %v588 = vrot.slane %v586, 4
        %v589 = vrot.slane %v535, 5
        %v590 = vsel %vm583, %v588, %v589
        %v591 = vrot.slane %v536, 5
        %v592 = vrot.slane %v591, 4
        %v593 = vrot.slane %v537, 5
        %v594 = vsel %vm583, %v592, %v593
        %v595 = vrot.slane %v593, 4
        %v596 = vrot.slane %v538, 5
        %v597 = vsel %vm583, %v595, %v596
        %v598 = vrot.slane %v539, 5
        %v599 = vrot.slane %v598, 4
        %v600 = vrot.slane %v540, 5
        %v601 = vsel %vm583, %v599, %v600
        %v602 = vrot.slane %v600, 4
        %v603 = vrot.slane %v541, 5
        %v604 = vsel %vm583, %v602, %v603
        %v605 = vrot.slane %v542, 5
        %v606 = vrot.slane %v605, 4
        %v607 = vrot.slane %v543, 5
        %v608 = vsel %vm583, %v606, %v607
        %v609 = vrot.slane %v607, 4
        %v610 = vrot.slane %v544, 5
        %v611 = vsel %vm583, %v609, %v610
        %v612 = vrot.slane %v545, 5
        %v613 = vrot.slane %v612, 4
        %v614 = vrot.slane %v546, 5
        %v615 = vsel %vm583, %v613, %v614
        %v616 = vrot.slane %v614, 4
        %v617 = vrot.slane %v547, 5
        %v618 = vsel %vm583, %v616, %v617
        %v619 = vrot.slane %v548, 5
        %v620 = vrot.slane %v619, 4
        %v621 = vrot.slane %v549, 5
        %v622 = vsel %vm583, %v620, %v621
        %v623 = vrot.slane %v621, 4
        %v624 = vrot.slane %v550, 5
        %v625 = vsel %vm583, %v623, %v624
        %v626 = vrot.slane %v551, 5
        %v627 = vrot.slane %v626, 4
        %v628 = vrot.slane %v552, 5
        %v629 = vsel %vm583, %v627, %v628
        %v630 = vrot.slane %v628, 4
        %v631 = vrot.slane %v553, 5
        %v632 = vsel %vm583, %v630, %v631
        %v633 = vrot.slane %v554, 5
        %v634 = vrot.slane %v633, 4
        %v635 = vrot.slane %v555, 5
        %v636 = vsel %vm583, %v634, %v635
        %v637 = vrot.slane %v635, 4
        %v638 = vrot.slane %v556, 5
        %v639 = vsel %vm583, %v637, %v638
        %640 = vrot.lane.b32.xlu0 %v587, 8
        %v641 = vpop.permute.xlu0 %640
        %642 = vrot.lane.b32.xlu0 %v590, 8
        %v643 = vpop.permute.xlu0 %642
        %644 = vrot.lane.b32.xlu0 %v594, 8
        %v645 = vpop.permute.xlu0 %644
        %646 = vrot.lane.b32.xlu0 %v597, 8
        %v647 = vpop.permute.xlu0 %646
        %648 = vrot.lane.b32.xlu0 %v601, 8
        %v649 = vpop.permute.xlu0 %648
        %650 = vrot.lane.b32.xlu0 %v604, 8
        %v651 = vpop.permute.xlu0 %650
        %652 = vrot.lane.b32.xlu0 %v608, 8
        %v653 = vpop.permute.xlu0 %652
        %654 = vrot.lane.b32.xlu0 %v611, 8
        %v655 = vpop.permute.xlu0 %654
        %656 = vrot.lane.b32.xlu0 %v615, 8
        %v657 = vpop.permute.xlu0 %656
        %658 = vrot.lane.b32.xlu0 %v618, 8
        %v659 = vpop.permute.xlu0 %658
        %660 = vrot.lane.b32.xlu0 %v622, 8
        %v661 = vpop.permute.xlu0 %660
        %662 = vrot.lane.b32.xlu0 %v625, 8
        %v663 = vpop.permute.xlu0 %662
        %664 = vrot.lane.b32.xlu0 %v629, 8
        %v665 = vpop.permute.xlu0 %664
        %666 = vrot.lane.b32.xlu0 %v632, 8
        %v667 = vpop.permute.xlu0 %666
        %668 = vrot.lane.b32.xlu0 %v636, 8
        %v669 = vpop.permute.xlu0 %668
        %670 = vrot.lane.b32.xlu0 %v639, 8
        %v671 = vpop.permute.xlu0 %670
        %vm688 = vcmask 93248
        %689 = vst.msk [vmem:[#allocation2] sm:$0xf] %vm688, %v641
        %690 = vst.msk [vmem:[#allocation2 + $0x4] sm:$0xf] %vm688, %v643
        %691 = vst.msk [vmem:[#allocation2 + $0x8] sm:$0xf] %vm688, %v645
        %692 = vst.msk [vmem:[#allocation2 + $0xc] sm:$0xf] %vm688, %v647
        %693 = vst.msk [vmem:[#allocation2 + $0x10] sm:$0xf] %vm688, %v649
        %694 = vst.msk [vmem:[#allocation2 + $0x14] sm:$0xf] %vm688, %v651
        %695 = vst.msk [vmem:[#allocation2 + $0x18] sm:$0xf] %vm688, %v653
        %696 = vst.msk [vmem:[#allocation2 + $0x1c] sm:$0xf] %vm688, %v655
        %697 = vst.msk [vmem:[#allocation2 + $0x20] sm:$0xf] %vm688, %v657
        %698 = vst.msk [vmem:[#allocation2 + $0x24] sm:$0xf] %vm688, %v659
        %699 = vst.msk [vmem:[#allocation2 + $0x28] sm:$0xf] %vm688, %v661
        %700 = vst.msk [vmem:[#allocation2 + $0x2c] sm:$0xf] %vm688, %v663
        %701 = vst.msk [vmem:[#allocation2 + $0x30] sm:$0xf] %vm688, %v665
        %702 = vst.msk [vmem:[#allocation2 + $0x34] sm:$0xf] %vm688, %v667
        %703 = vst.msk [vmem:[#allocation2 + $0x38] sm:$0xf] %vm688, %v669
        %704 = vst.msk [vmem:[#allocation2 + $0x3c] sm:$0xf] %vm688, %v671
        %s705 = sadd.s32 %s212, 1
        %s706 = smul.u32 %s705, 3
        %s707 = smul.addr %s706, 4
        %s708 = scalar_lea.vmem %s209, %s707
        %v709 = vld [vmem:[%s708] sm:$0xf]
        %v710 = vld [vmem:[%s708 + $0x4] sm:$0xf]
        %v711 = vld [vmem:[%s708 + $0xc] sm:$0xf]
        %v712 = vld [vmem:[%s708 + $0x10] sm:$0xf]
        %v713 = vld [vmem:[%s708 + $0x18] sm:$0xf]
        %v714 = vld [vmem:[%s708 + $0x1c] sm:$0xf]
        %v715 = vld [vmem:[%s708 + $0x24] sm:$0xf]
        %v716 = vld [vmem:[%s708 + $0x28] sm:$0xf]
        %v717 = vld [vmem:[%s708 + $0x30] sm:$0xf]
        %v718 = vld [vmem:[%s708 + $0x34] sm:$0xf]
        %v719 = vld [vmem:[%s708 + $0x3c] sm:$0xf]
        %v720 = vld [vmem:[%s708 + $0x40] sm:$0xf]
        %v721 = vld [vmem:[%s708 + $0x48] sm:$0xf]
        %v722 = vld [vmem:[%s708 + $0x4c] sm:$0xf]
        %v723 = vld [vmem:[%s708 + $0x54] sm:$0xf]
        %v724 = vld [vmem:[%s708 + $0x58] sm:$0xf]
        %741 = vrot.lane.b32.xlu0 %v709, 12
        %v742 = vpop.permute.xlu0 %741
        %743 = vrot.lane.b32.xlu0 %v710, 12
        %v744 = vpop.permute.xlu0 %743
        %745 = vrot.lane.b32.xlu0 %v711, 12
        %v746 = vpop.permute.xlu0 %745
        %747 = vrot.lane.b32.xlu0 %v712, 12
        %v748 = vpop.permute.xlu0 %747
        %749 = vrot.lane.b32.xlu0 %v713, 12
        %v750 = vpop.permute.xlu0 %749
        %751 = vrot.lane.b32.xlu0 %v714, 12
        %v752 = vpop.permute.xlu0 %751
        %753 = vrot.lane.b32.xlu0 %v715, 12
        %v754 = vpop.permute.xlu0 %753
        %755 = vrot.lane.b32.xlu0 %v716, 12
        %v756 = vpop.permute.xlu0 %755
        %757 = vrot.lane.b32.xlu0 %v717, 12
        %v758 = vpop.permute.xlu0 %757
        %759 = vrot.lane.b32.xlu0 %v718, 12
        %v760 = vpop.permute.xlu0 %759
        %761 = vrot.lane.b32.xlu0 %v719, 12
        %v762 = vpop.permute.xlu0 %761
        %763 = vrot.lane.b32.xlu0 %v720, 12
        %v764 = vpop.permute.xlu0 %763
        %765 = vrot.lane.b32.xlu0 %v721, 12
        %v766 = vpop.permute.xlu0 %765
        %767 = vrot.lane.b32.xlu0 %v722, 12
        %v768 = vpop.permute.xlu0 %767
        %769 = vrot.lane.b32.xlu0 %v723, 12
        %v770 = vpop.permute.xlu0 %769
        %771 = vrot.lane.b32.xlu0 %v724, 12
        %v772 = vpop.permute.xlu0 %771
        %vm789 = vcmask 126048
        %790 = vst.msk [vmem:[#allocation2] sm:$0xf] %vm789, %v742
        %791 = vst.msk [vmem:[#allocation2 + $0x4] sm:$0xf] %vm789, %v744
        %792 = vst.msk [vmem:[#allocation2 + $0x8] sm:$0xf] %vm789, %v746
        %793 = vst.msk [vmem:[#allocation2 + $0xc] sm:$0xf] %vm789, %v748
        %794 = vst.msk [vmem:[#allocation2 + $0x10] sm:$0xf] %vm789, %v750
        %795 = vst.msk [vmem:[#allocation2 + $0x14] sm:$0xf] %vm789, %v752
        %796 = vst.msk [vmem:[#allocation2 + $0x18] sm:$0xf] %vm789, %v754
        %797 = vst.msk [vmem:[#allocation2 + $0x1c] sm:$0xf] %vm789, %v756
        %798 = vst.msk [vmem:[#allocation2 + $0x20] sm:$0xf] %vm789, %v758
        %799 = vst.msk [vmem:[#allocation2 + $0x24] sm:$0xf] %vm789, %v760
        %800 = vst.msk [vmem:[#allocation2 + $0x28] sm:$0xf] %vm789, %v762
        %801 = vst.msk [vmem:[#allocation2 + $0x2c] sm:$0xf] %vm789, %v764
        %802 = vst.msk [vmem:[#allocation2 + $0x30] sm:$0xf] %vm789, %v766
        %803 = vst.msk [vmem:[#allocation2 + $0x34] sm:$0xf] %vm789, %v768
        %804 = vst.msk [vmem:[#allocation2 + $0x38] sm:$0xf] %vm789, %v770
        %805 = vst.msk [vmem:[#allocation2 + $0x3c] sm:$0xf] %vm789, %v772
        %v806 = vld [vmem:[%s708] sm:$0xf]
        %v807 = vld [vmem:[%s708 + $0x4] sm:$0xf]
        %v808 = vld [vmem:[%s708 + $0x8] sm:$0x1]
        %v809 = vld [vmem:[%s708 + $0xc] sm:$0xf]
        %v810 = vld [vmem:[%s708 + $0x10] sm:$0xf]
        %v811 = vld [vmem:[%s708 + $0x14] sm:$0x1]
        %v812 = vld [vmem:[%s708 + $0x18] sm:$0xf]
        %v813 = vld [vmem:[%s708 + $0x1c] sm:$0xf]
        %v814 = vld [vmem:[%s708 + $0x20] sm:$0x1]
        %v815 = vld [vmem:[%s708 + $0x24] sm:$0xf]
        %v816 = vld [vmem:[%s708 + $0x28] sm:$0xf]
        %v817 = vld [vmem:[%s708 + $0x2c] sm:$0x1]
        %v818 = vld [vmem:[%s708 + $0x30] sm:$0xf]
        %v819 = vld [vmem:[%s708 + $0x34] sm:$0xf]
        %v820 = vld [vmem:[%s708 + $0x38] sm:$0x1]
        %v821 = vld [vmem:[%s708 + $0x3c] sm:$0xf]
        %v822 = vld [vmem:[%s708 + $0x40] sm:$0xf]
        %v823 = vld [vmem:[%s708 + $0x44] sm:$0x1]
        %v824 = vld [vmem:[%s708 + $0x48] sm:$0xf]
        %v825 = vld [vmem:[%s708 + $0x4c] sm:$0xf]
        %v826 = vld [vmem:[%s708 + $0x50] sm:$0x1]
        %v827 = vld [vmem:[%s708 + $0x54] sm:$0xf]
        %v828 = vld [vmem:[%s708 + $0x58] sm:$0xf]
        %v829 = vld [vmem:[%s708 + $0x5c] sm:$0x1]
        %v831 = vshrl.u32 %v806, 16
        %v833 = vrot.slane %v831, 4
        %v834 = vshll.u32 %v806, 16
        %v836 = vrot.slane %v834, 5
        %v837 = vor.u32 %v833, %v836
        %v838 = vrot.slane %v837, 4
        %v840 = vshll.u32 %v807, 16
        %v842 = vrot.slane %v840, 5
        %v843 = vsel %vm275, %v838, %v842
        %v844 = vshrl.u32 %v807, 16
        %v846 = vrot.slane %v844, 4
        %v847 = vor.u32 %v846, %v842
        %v848 = vrot.slane %v847, 4
        %v850 = vshll.u32 %v808, 16
        %v852 = vrot.slane %v850, 5
        %v853 = vsel %vm275, %v848, %v852
        %v855 = vshrl.u32 %v809, 16
        %v857 = vrot.slane %v855, 4
        %v858 = vshll.u32 %v809, 16
        %v860 = vrot.slane %v858, 5
        %v861 = vor.u32 %v857, %v860
        %v862 = vrot.slane %v861, 4
        %v864 = vshll.u32 %v810, 16
        %v866 = vrot.slane %v864, 5
        %v867 = vsel %vm275, %v862, %v866
        %v868 = vshrl.u32 %v810, 16
        %v870 = vrot.slane %v868, 4
        %v871 = vor.u32 %v870, %v866
        %v872 = vrot.slane %v871, 4
        %v874 = vshll.u32 %v811, 16
        %v876 = vrot.slane %v874, 5
        %v877 = vsel %vm275, %v872, %v876
        %v879 = vshrl.u32 %v812, 16
        %v881 = vrot.slane %v879, 4
        %v882 = vshll.u32 %v812, 16
        %v884 = vrot.slane %v882, 5
        %v885 = vor.u32 %v881, %v884
        %v886 = vrot.slane %v885, 4
        %v888 = vshll.u32 %v813, 16
        %v890 = vrot.slane %v888, 5
        %v891 = vsel %vm275, %v886, %v890
        %v892 = vshrl.u32 %v813, 16
        %v894 = vrot.slane %v892, 4
        %v895 = vor.u32 %v894, %v890
        %v896 = vrot.slane %v895, 4
        %v898 = vshll.u32 %v814, 16
        %v900 = vrot.slane %v898, 5
        %v901 = vsel %vm275, %v896, %v900
        %v903 = vshrl.u32 %v815, 16
        %v905 = vrot.slane %v903, 4
        %v906 = vshll.u32 %v815, 16
        %v908 = vrot.slane %v906, 5
        %v909 = vor.u32 %v905, %v908
        %v910 = vrot.slane %v909, 4
        %v912 = vshll.u32 %v816, 16
        %v914 = vrot.slane %v912, 5
        %v915 = vsel %vm275, %v910, %v914
        %v916 = vshrl.u32 %v816, 16
        %v918 = vrot.slane %v916, 4
        %v919 = vor.u32 %v918, %v914
        %v920 = vrot.slane %v919, 4
        %v922 = vshll.u32 %v817, 16
        %v924 = vrot.slane %v922, 5
        %v925 = vsel %vm275, %v920, %v924
        %v927 = vshrl.u32 %v818, 16
        %v929 = vrot.slane %v927, 4
        %v930 = vshll.u32 %v818, 16
        %v932 = vrot.slane %v930, 5
        %v933 = vor.u32 %v929, %v932
        %v934 = vrot.slane %v933, 4
        %v936 = vshll.u32 %v819, 16
        %v938 = vrot.slane %v936, 5
        %v939 = vsel %vm275, %v934, %v938
        %v940 = vshrl.u32 %v819, 16
        %v942 = vrot.slane %v940, 4
        %v943 = vor.u32 %v942, %v938
        %v944 = vrot.slane %v943, 4
        %v946 = vshll.u32 %v820, 16
        %v948 = vrot.slane %v946, 5
        %v949 = vsel %vm275, %v944, %v948
        %v951 = vshrl.u32 %v821, 16
        %v953 = vrot.slane %v951, 4
        %v954 = vshll.u32 %v821, 16
        %v956 = vrot.slane %v954, 5
        %v957 = vor.u32 %v953, %v956
        %v958 = vrot.slane %v957, 4
        %v960 = vshll.u32 %v822, 16
        %v962 = vrot.slane %v960, 5
        %v963 = vsel %vm275, %v958, %v962
        %v964 = vshrl.u32 %v822, 16
        %v966 = vrot.slane %v964, 4
        %v967 = vor.u32 %v966, %v962
        %v968 = vrot.slane %v967, 4
        %v970 = vshll.u32 %v823, 16
        %v972 = vrot.slane %v970, 5
        %v973 = vsel %vm275, %v968, %v972
        %v975 = vshrl.u32 %v824, 16
        %v977 = vrot.slane %v975, 4
        %v978 = vshll.u32 %v824, 16
        %v980 = vrot.slane %v978, 5
        %v981 = vor.u32 %v977, %v980
        %v982 = vrot.slane %v981, 4
        %v984 = vshll.u32 %v825, 16
        %v986 = vrot.slane %v984, 5
        %v987 = vsel %vm275, %v982, %v986
        %v988 = vshrl.u32 %v825, 16
        %v990 = vrot.slane %v988, 4
        %v991 = vor.u32 %v990, %v986
        %v992 = vrot.slane %v991, 4
        %v994 = vshll.u32 %v826, 16
        %v996 = vrot.slane %v994, 5
        %v997 = vsel %vm275, %v992, %v996
        %v999 = vshrl.u32 %v827, 16
        %v1001 = vrot.slane %v999, 4
        %v1002 = vshll.u32 %v827, 16
        %v1004 = vrot.slane %v1002, 5
        %v1005 = vor.u32 %v1001, %v1004
        %v1006 = vrot.slane %v1005, 4
        %v1008 = vshll.u32 %v828, 16
        %v1010 = vrot.slane %v1008, 5
        %v1011 = vsel %vm275, %v1006, %v1010
        %v1012 = vshrl.u32 %v828, 16
        %v1014 = vrot.slane %v1012, 4
        %v1015 = vor.u32 %v1014, %v1010
        %v1016 = vrot.slane %v1015, 4
        %v1018 = vshll.u32 %v829, 16
        %v1020 = vrot.slane %v1018, 5
        %v1021 = vsel %vm275, %v1016, %v1020
        %1022 = vrot.lane.b32.xlu0 %v843, 16
        %v1023 = vpop.permute.xlu0 %1022
        %1024 = vrot.lane.b32.xlu0 %v853, 16
        %v1025 = vpop.permute.xlu0 %1024
        %1026 = vrot.lane.b32.xlu0 %v867, 16
        %v1027 = vpop.permute.xlu0 %1026
        %1028 = vrot.lane.b32.xlu0 %v877, 16
        %v1029 = vpop.permute.xlu0 %1028
        %1030 = vrot.lane.b32.xlu0 %v891, 16
        %v1031 = vpop.permute.xlu0 %1030
        %1032 = vrot.lane.b32.xlu0 %v901, 16
        %v1033 = vpop.permute.xlu0 %1032
        %1034 = vrot.lane.b32.xlu0 %v915, 16
        %v1035 = vpop.permute.xlu0 %1034
        %1036 = vrot.lane.b32.xlu0 %v925, 16
        %v1037 = vpop.permute.xlu0 %1036
        %1038 = vrot.lane.b32.xlu0 %v939, 16
        %v1039 = vpop.permute.xlu0 %1038
        %1040 = vrot.lane.b32.xlu0 %v949, 16
        %v1041 = vpop.permute.xlu0 %1040
        %1042 = vrot.lane.b32.xlu0 %v963, 16
        %v1043 = vpop.permute.xlu0 %1042
        %1044 = vrot.lane.b32.xlu0 %v973, 16
        %v1045 = vpop.permute.xlu0 %1044
        %1046 = vrot.lane.b32.xlu0 %v987, 16
        %v1047 = vpop.permute.xlu0 %1046
        %1048 = vrot.lane.b32.xlu0 %v997, 16
        %v1049 = vpop.permute.xlu0 %1048
        %1050 = vrot.lane.b32.xlu0 %v1011, 16
        %v1051 = vpop.permute.xlu0 %1050
        %1052 = vrot.lane.b32.xlu0 %v1021, 16
        %v1053 = vpop.permute.xlu0 %1052
        %vm1070 = vcmask 158848
        %1071 = vst.msk [vmem:[#allocation2] sm:$0xf] %vm1070, %v1023
        %1072 = vst.msk [vmem:[#allocation2 + $0x4] sm:$0xf] %vm1070, %v1025
        %1073 = vst.msk [vmem:[#allocation2 + $0x8] sm:$0xf] %vm1070, %v1027
        %1074 = vst.msk [vmem:[#allocation2 + $0xc] sm:$0xf] %vm1070, %v1029
        %1075 = vst.msk [vmem:[#allocation2 + $0x10] sm:$0xf] %vm1070, %v1031
        %1076 = vst.msk [vmem:[#allocation2 + $0x14] sm:$0xf] %vm1070, %v1033
        %1077 = vst.msk [vmem:[#allocation2 + $0x18] sm:$0xf] %vm1070, %v1035
        %1078 = vst.msk [vmem:[#allocation2 + $0x1c] sm:$0xf] %vm1070, %v1037
        %1079 = vst.msk [vmem:[#allocation2 + $0x20] sm:$0xf] %vm1070, %v1039
        %1080 = vst.msk [vmem:[#allocation2 + $0x24] sm:$0xf] %vm1070, %v1041
        %1081 = vst.msk [vmem:[#allocation2 + $0x28] sm:$0xf] %vm1070, %v1043
        %1082 = vst.msk [vmem:[#allocation2 + $0x2c] sm:$0xf] %vm1070, %v1045
        %1083 = vst.msk [vmem:[#allocation2 + $0x30] sm:$0xf] %vm1070, %v1047
        %1084 = vst.msk [vmem:[#allocation2 + $0x34] sm:$0xf] %vm1070, %v1049
        %1085 = vst.msk [vmem:[#allocation2 + $0x38] sm:$0xf] %vm1070, %v1051
        %1086 = vst.msk [vmem:[#allocation2 + $0x3c] sm:$0xf] %vm1070, %v1053
        %v1087 = vld [vmem:[%s708] sm:$0xe]
        %v1088 = vld [vmem:[%s708 + $0x4] sm:$0xf]
        %v1089 = vld [vmem:[%s708 + $0x8] sm:$0x1]
        %v1090 = vld [vmem:[%s708 + $0xc] sm:$0xe]
        %v1091 = vld [vmem:[%s708 + $0x10] sm:$0xf]
        %v1092 = vld [vmem:[%s708 + $0x14] sm:$0x1]
        %v1093 = vld [vmem:[%s708 + $0x18] sm:$0xe]
        %v1094 = vld [vmem:[%s708 + $0x1c] sm:$0xf]
        %v1095 = vld [vmem:[%s708 + $0x20] sm:$0x1]
        %v1096 = vld [vmem:[%s708 + $0x24] sm:$0xe]
        %v1097 = vld [vmem:[%s708 + $0x28] sm:$0xf]
        %v1098 = vld [vmem:[%s708 + $0x2c] sm:$0x1]
        %v1099 = vld [vmem:[%s708 + $0x30] sm:$0xe]
        %v1100 = vld [vmem:[%s708 + $0x34] sm:$0xf]
        %v1101 = vld [vmem:[%s708 + $0x38] sm:$0x1]
        %v1102 = vld [vmem:[%s708 + $0x3c] sm:$0xe]
        %v1103 = vld [vmem:[%s708 + $0x40] sm:$0xf]
        %v1104 = vld [vmem:[%s708 + $0x44] sm:$0x1]
        %v1105 = vld [vmem:[%s708 + $0x48] sm:$0xe]
        %v1106 = vld [vmem:[%s708 + $0x4c] sm:$0xf]
        %v1107 = vld [vmem:[%s708 + $0x50] sm:$0x1]
        %v1108 = vld [vmem:[%s708 + $0x54] sm:$0xe]
        %v1109 = vld [vmem:[%s708 + $0x58] sm:$0xf]
        %v1110 = vld [vmem:[%s708 + $0x5c] sm:$0x1]
        %v1135 = vrot.slane %v1087, 5
        %v1136 = vrot.slane %v1135, 4
        %v1137 = vrot.slane %v1088, 5
        %v1138 = vsel %vm583, %v1136, %v1137
        %v1139 = vrot.slane %v1137, 4
        %v1140 = vrot.slane %v1089, 5
        %v1141 = vsel %vm583, %v1139, %v1140
        %v1142 = vrot.slane %v1090, 5
        %v1143 = vrot.slane %v1142, 4
        %v1144 = vrot.slane %v1091, 5
        %v1145 = vsel %vm583, %v1143, %v1144
        %v1146 = vrot.slane %v1144, 4
        %v1147 = vrot.slane %v1092, 5
        %v1148 = vsel %vm583, %v1146, %v1147
        %v1149 = vrot.slane %v1093, 5
        %v1150 = vrot.slane %v1149, 4
        %v1151 = vrot.slane %v1094, 5
        %v1152 = vsel %vm583, %v1150, %v1151
        %v1153 = vrot.slane %v1151, 4
        %v1154 = vrot.slane %v1095, 5
        %v1155 = vsel %vm583, %v1153, %v1154
        %v1156 = vrot.slane %v1096, 5
        %v1157 = vrot.slane %v1156, 4
        %v1158 = vrot.slane %v1097, 5
        %v1159 = vsel %vm583, %v1157, %v1158
        %v1160 = vrot.slane %v1158, 4
        %v1161 = vrot.slane %v1098, 5
        %v1162 = vsel %vm583, %v1160, %v1161
        %v1163 = vrot.slane %v1099, 5
        %v1164 = vrot.slane %v1163, 4
        %v1165 = vrot.slane %v1100, 5
        %v1166 = vsel %vm583, %v1164, %v1165
        %v1167 = vrot.slane %v1165, 4
        %v1168 = vrot.slane %v1101, 5
        %v1169 = vsel %vm583, %v1167, %v1168
        %v1170 = vrot.slane %v1102, 5
        %v1171 = vrot.slane %v1170, 4
        %v1172 = vrot.slane %v1103, 5
        %v1173 = vsel %vm583, %v1171, %v1172
        %v1174 = vrot.slane %v1172, 4
        %v1175 = vrot.slane %v1104, 5
        %v1176 = vsel %vm583, %v1174, %v1175
        %v1177 = vrot.slane %v1105, 5
        %v1178 = vrot.slane %v1177, 4
        %v1179 = vrot.slane %v1106, 5
        %v1180 = vsel %vm583, %v1178, %v1179
        %v1181 = vrot.slane %v1179, 4
        %v1182 = vrot.slane %v1107, 5
        %v1183 = vsel %vm583, %v1181, %v1182
        %v1184 = vrot.slane %v1108, 5
        %v1185 = vrot.slane %v1184, 4
        %v1186 = vrot.slane %v1109, 5
        %v1187 = vsel %vm583, %v1185, %v1186
        %v1188 = vrot.slane %v1186, 4
        %v1189 = vrot.slane %v1110, 5
        %v1190 = vsel %vm583, %v1188, %v1189
        %1191 = vrot.lane.b32.xlu0 %v1138, 20
        %v1192 = vpop.permute.xlu0 %1191
        %1193 = vrot.lane.b32.xlu0 %v1141, 20
        %v1194 = vpop.permute.xlu0 %1193
        %1195 = vrot.lane.b32.xlu0 %v1145, 20
        %v1196 = vpop.permute.xlu0 %1195
        %1197 = vrot.lane.b32.xlu0 %v1148, 20
        %v1198 = vpop.permute.xlu0 %1197
        %1199 = vrot.lane.b32.xlu0 %v1152, 20
        %v1200 = vpop.permute.xlu0 %1199
        %1201 = vrot.lane.b32.xlu0 %v1155, 20
        %v1202 = vpop.permute.xlu0 %1201
        %1203 = vrot.lane.b32.xlu0 %v1159, 20
        %v1204 = vpop.permute.xlu0 %1203
        %1205 = vrot.lane.b32.xlu0 %v1162, 20
        %v1206 = vpop.permute.xlu0 %1205
        %1207 = vrot.lane.b32.xlu0 %v1166, 20
        %v1208 = vpop.permute.xlu0 %1207
        %1209 = vrot.lane.b32.xlu0 %v1169, 20
        %v1210 = vpop.permute.xlu0 %1209
        %1211 = vrot.lane.b32.xlu0 %v1173, 20
        %v1212 = vpop.permute.xlu0 %1211
        %1213 = vrot.lane.b32.xlu0 %v1176, 20
        %v1214 = vpop.permute.xlu0 %1213
        %1215 = vrot.lane.b32.xlu0 %v1180, 20
        %v1216 = vpop.permute.xlu0 %1215
        %1217 = vrot.lane.b32.xlu0 %v1183, 20
        %v1218 = vpop.permute.xlu0 %1217
        %1219 = vrot.lane.b32.xlu0 %v1187, 20
        %v1220 = vpop.permute.xlu0 %1219
        %1221 = vrot.lane.b32.xlu0 %v1190, 20
        %v1222 = vpop.permute.xlu0 %1221
        %vm1239 = vcmask 191648
        %1240 = vst.msk [vmem:[#allocation2] sm:$0xf] %vm1239, %v1192
        %1241 = vst.msk [vmem:[#allocation2 + $0x4] sm:$0xf] %vm1239, %v1194
        %1242 = vst.msk [vmem:[#allocation2 + $0x8] sm:$0xf] %vm1239, %v1196
        %1243 = vst.msk [vmem:[#allocation2 + $0xc] sm:$0xf] %vm1239, %v1198
        %1244 = vst.msk [vmem:[#allocation2 + $0x10] sm:$0xf] %vm1239, %v1200
        %1245 = vst.msk [vmem:[#allocation2 + $0x14] sm:$0xf] %vm1239, %v1202
        %1246 = vst.msk [vmem:[#allocation2 + $0x18] sm:$0xf] %vm1239, %v1204
        %1247 = vst.msk [vmem:[#allocation2 + $0x1c] sm:$0xf] %vm1239, %v1206
        %1248 = vst.msk [vmem:[#allocation2 + $0x20] sm:$0xf] %vm1239, %v1208
        %1249 = vst.msk [vmem:[#allocation2 + $0x24] sm:$0xf] %vm1239, %v1210
        %1250 = vst.msk [vmem:[#allocation2 + $0x28] sm:$0xf] %vm1239, %v1212
        %1251 = vst.msk [vmem:[#allocation2 + $0x2c] sm:$0xf] %vm1239, %v1214
        %1252 = vst.msk [vmem:[#allocation2 + $0x30] sm:$0xf] %vm1239, %v1216
        %1253 = vst.msk [vmem:[#allocation2 + $0x34] sm:$0xf] %vm1239, %v1218
        %1254 = vst.msk [vmem:[#allocation2 + $0x38] sm:$0xf] %vm1239, %v1220
        %1255 = vst.msk [vmem:[#allocation2 + $0x3c] sm:$0xf] %vm1239, %v1222
        %s1256 = sadd.s32 %s212, 2
        %s1257 = smul.u32 %s1256, 3
        %s1258 = smul.addr %s1257, 4
        %s1259 = scalar_lea.vmem %s209, %s1258
        %v1260 = vld [vmem:[%s1259] sm:$0xf]
        %v1261 = vld [vmem:[%s1259 + $0x4] sm:$0xf]
        %v1262 = vld [vmem:[%s1259 + $0xc] sm:$0xf]
        %v1263 = vld [vmem:[%s1259 + $0x10] sm:$0xf]
        %v1264 = vld [vmem:[%s1259 + $0x18] sm:$0xf]
        %v1265 = vld [vmem:[%s1259 + $0x1c] sm:$0xf]
        %v1266 = vld [vmem:[%s1259 + $0x24] sm:$0xf]
        %v1267 = vld [vmem:[%s1259 + $0x28] sm:$0xf]
        %v1268 = vld [vmem:[%s1259 + $0x30] sm:$0xf]
        %v1269 = vld [vmem:[%s1259 + $0x34] sm:$0xf]
        %v1270 = vld [vmem:[%s1259 + $0x3c] sm:$0xf]
        %v1271 = vld [vmem:[%s1259 + $0x40] sm:$0xf]
        %v1272 = vld [vmem:[%s1259 + $0x48] sm:$0xf]
        %v1273 = vld [vmem:[%s1259 + $0x4c] sm:$0xf]
        %v1274 = vld [vmem:[%s1259 + $0x54] sm:$0xf]
        %v1275 = vld [vmem:[%s1259 + $0x58] sm:$0xf]
        %1292 = vrot.lane.b32.xlu0 %v1260, 24
        %v1293 = vpop.permute.xlu0 %1292
        %1294 = vrot.lane.b32.xlu0 %v1261, 24
        %v1295 = vpop.permute.xlu0 %1294
        %1296 = vrot.lane.b32.xlu0 %v1262, 24
        %v1297 = vpop.permute.xlu0 %1296
        %1298 = vrot.lane.b32.xlu0 %v1263, 24
        %v1299 = vpop.permute.xlu0 %1298
        %1300 = vrot.lane.b32.xlu0 %v1264, 24
        %v1301 = vpop.permute.xlu0 %1300
        %1302 = vrot.lane.b32.xlu0 %v1265, 24
        %v1303 = vpop.permute.xlu0 %1302
        %1304 = vrot.lane.b32.xlu0 %v1266, 24
        %v1305 = vpop.permute.xlu0 %1304
        %1306 = vrot.lane.b32.xlu0 %v1267, 24
        %v1307 = vpop.permute.xlu0 %1306
        %1308 = vrot.lane.b32.xlu0 %v1268, 24
        %v1309 = vpop.permute.xlu0 %1308
        %1310 = vrot.lane.b32.xlu0 %v1269, 24
        %v1311 = vpop.permute.xlu0 %1310
        %1312 = vrot.lane.b32.xlu0 %v1270, 24
        %v1313 = vpop.permute.xlu0 %1312
        %1314 = vrot.lane.b32.xlu0 %v1271, 24
        %v1315 = vpop.permute.xlu0 %1314
        %1316 = vrot.lane.b32.xlu0 %v1272, 24
        %v1317 = vpop.permute.xlu0 %1316
        %1318 = vrot.lane.b32.xlu0 %v1273, 24
        %v1319 = vpop.permute.xlu0 %1318
        %1320 = vrot.lane.b32.xlu0 %v1274, 24
        %v1321 = vpop.permute.xlu0 %1320
        %1322 = vrot.lane.b32.xlu0 %v1275, 24
        %v1323 = vpop.permute.xlu0 %1322
        %vm1340 = vcmask 224448
        %1341 = vst.msk [vmem:[#allocation2] sm:$0xf] %vm1340, %v1293
        %1342 = vst.msk [vmem:[#allocation2 + $0x4] sm:$0xf] %vm1340, %v1295
        %1343 = vst.msk [vmem:[#allocation2 + $0x8] sm:$0xf] %vm1340, %v1297
        %1344 = vst.msk [vmem:[#allocation2 + $0xc] sm:$0xf] %vm1340, %v1299
        %1345 = vst.msk [vmem:[#allocation2 + $0x10] sm:$0xf] %vm1340, %v1301
        %1346 = vst.msk [vmem:[#allocation2 + $0x14] sm:$0xf] %vm1340, %v1303
        %1347 = vst.msk [vmem:[#allocation2 + $0x18] sm:$0xf] %vm1340, %v1305
        %1348 = vst.msk [vmem:[#allocation2 + $0x1c] sm:$0xf] %vm1340, %v1307
        %1349 = vst.msk [vmem:[#allocation2 + $0x20] sm:$0xf] %vm1340, %v1309
        %1350 = vst.msk [vmem:[#allocation2 + $0x24] sm:$0xf] %vm1340, %v1311
        %1351 = vst.msk [vmem:[#allocation2 + $0x28] sm:$0xf] %vm1340, %v1313
        %1352 = vst.msk [vmem:[#allocation2 + $0x2c] sm:$0xf] %vm1340, %v1315
        %1353 = vst.msk [vmem:[#allocation2 + $0x30] sm:$0xf] %vm1340, %v1317
        %1354 = vst.msk [vmem:[#allocation2 + $0x34] sm:$0xf] %vm1340, %v1319
        %1355 = vst.msk [vmem:[#allocation2 + $0x38] sm:$0xf] %vm1340, %v1321
        %1356 = vst.msk [vmem:[#allocation2 + $0x3c] sm:$0xf] %vm1340, %v1323
        %v1357 = vld [vmem:[%s1259] sm:$0xf]
        %v1358 = vld [vmem:[%s1259 + $0x4] sm:$0xf]
        %v1359 = vld [vmem:[%s1259 + $0x8] sm:$0x1]
        %v1360 = vld [vmem:[%s1259 + $0xc] sm:$0xf]
        %v1361 = vld [vmem:[%s1259 + $0x10] sm:$0xf]
        %v1362 = vld [vmem:[%s1259 + $0x14] sm:$0x1]
        %v1363 = vld [vmem:[%s1259 + $0x18] sm:$0xf]
        %v1364 = vld [vmem:[%s1259 + $0x1c] sm:$0xf]
        %v1365 = vld [vmem:[%s1259 + $0x20] sm:$0x1]
        %v1366 = vld [vmem:[%s1259 + $0x24] sm:$0xf]
        %v1367 = vld [vmem:[%s1259 + $0x28] sm:$0xf]
        %v1368 = vld [vmem:[%s1259 + $0x2c] sm:$0x1]
        %v1369 = vld [vmem:[%s1259 + $0x30] sm:$0xf]
        %v1370 = vld [vmem:[%s1259 + $0x34] sm:$0xf]
        %v1371 = vld [vmem:[%s1259 + $0x38] sm:$0x1]
        %v1372 = vld [vmem:[%s1259 + $0x3c] sm:$0xf]
        %v1373 = vld [vmem:[%s1259 + $0x40] sm:$0xf]
        %v1374 = vld [vmem:[%s1259 + $0x44] sm:$0x1]
        %v1375 = vld [vmem:[%s1259 + $0x48] sm:$0xf]
        %v1376 = vld [vmem:[%s1259 + $0x4c] sm:$0xf]
        %v1377 = vld [vmem:[%s1259 + $0x50] sm:$0x1]
        %v1378 = vld [vmem:[%s1259 + $0x54] sm:$0xf]
        %v1379 = vld [vmem:[%s1259 + $0x58] sm:$0xf]
        %v1380 = vld [vmem:[%s1259 + $0x5c] sm:$0x1]
        %v1382 = vshrl.u32 %v1357, 16
        %v1384 = vrot.slane %v1382, 4
        %v1385 = vshll.u32 %v1357, 16
        %v1387 = vrot.slane %v1385, 5
        %v1388 = vor.u32 %v1384, %v1387
        %v1389 = vrot.slane %v1388, 4
        %v1391 = vshll.u32 %v1358, 16
        %v1393 = vrot.slane %v1391, 5
        %v1394 = vsel %vm275, %v1389, %v1393
        %v1395 = vshrl.u32 %v1358, 16
        %v1397 = vrot.slane %v1395, 4
        %v1398 = vor.u32 %v1397, %v1393
        %v1399 = vrot.slane %v1398, 4
        %v1401 = vshll.u32 %v1359, 16
        %v1403 = vrot.slane %v1401, 5
        %v1404 = vsel %vm275, %v1399, %v1403
        %v1406 = vshrl.u32 %v1360, 16
        %v1408 = vrot.slane %v1406, 4
        %v1409 = vshll.u32 %v1360, 16
        %v1411 = vrot.slane %v1409, 5
        %v1412 = vor.u32 %v1408, %v1411
        %v1413 = vrot.slane %v1412, 4
        %v1415 = vshll.u32 %v1361, 16
        %v1417 = vrot.slane %v1415, 5
        %v1418 = vsel %vm275, %v1413, %v1417
        %v1419 = vshrl.u32 %v1361, 16
        %v1421 = vrot.slane %v1419, 4
        %v1422 = vor.u32 %v1421, %v1417
        %v1423 = vrot.slane %v1422, 4
        %v1425 = vshll.u32 %v1362, 16
        %v1427 = vrot.slane %v1425, 5
        %v1428 = vsel %vm275, %v1423, %v1427
        %v1430 = vshrl.u32 %v1363, 16
        %v1432 = vrot.slane %v1430, 4
        %v1433 = vshll.u32 %v1363, 16
        %v1435 = vrot.slane %v1433, 5
        %v1436 = vor.u32 %v1432, %v1435
        %v1437 = vrot.slane %v1436, 4
        %v1439 = vshll.u32 %v1364, 16
        %v1441 = vrot.slane %v1439, 5
        %v1442 = vsel %vm275, %v1437, %v1441
        %v1443 = vshrl.u32 %v1364, 16
        %v1445 = vrot.slane %v1443, 4
        %v1446 = vor.u32 %v1445, %v1441
        %v1447 = vrot.slane %v1446, 4
        %v1449 = vshll.u32 %v1365, 16
        %v1451 = vrot.slane %v1449, 5
        %v1452 = vsel %vm275, %v1447, %v1451
        %v1454 = vshrl.u32 %v1366, 16
        %v1456 = vrot.slane %v1454, 4
        %v1457 = vshll.u32 %v1366, 16
        %v1459 = vrot.slane %v1457, 5
        %v1460 = vor.u32 %v1456, %v1459
        %v1461 = vrot.slane %v1460, 4
        %v1463 = vshll.u32 %v1367, 16
        %v1465 = vrot.slane %v1463, 5
        %v1466 = vsel %vm275, %v1461, %v1465
        %v1467 = vshrl.u32 %v1367, 16
        %v1469 = vrot.slane %v1467, 4
        %v1470 = vor.u32 %v1469, %v1465
        %v1471 = vrot.slane %v1470, 4
        %v1473 = vshll.u32 %v1368, 16
        %v1475 = vrot.slane %v1473, 5
        %v1476 = vsel %vm275, %v1471, %v1475
        %v1478 = vshrl.u32 %v1369, 16
        %v1480 = vrot.slane %v1478, 4
        %v1481 = vshll.u32 %v1369, 16
        %v1483 = vrot.slane %v1481, 5
        %v1484 = vor.u32 %v1480, %v1483
        %v1485 = vrot.slane %v1484, 4
        %v1487 = vshll.u32 %v1370, 16
        %v1489 = vrot.slane %v1487, 5
        %v1490 = vsel %vm275, %v1485, %v1489
        %v1491 = vshrl.u32 %v1370, 16
        %v1493 = vrot.slane %v1491, 4
        %v1494 = vor.u32 %v1493, %v1489
        %v1495 = vrot.slane %v1494, 4
        %v1497 = vshll.u32 %v1371, 16
        %v1499 = vrot.slane %v1497, 5
        %v1500 = vsel %vm275, %v1495, %v1499
        %v1502 = vshrl.u32 %v1372, 16
        %v1504 = vrot.slane %v1502, 4
        %v1505 = vshll.u32 %v1372, 16
        %v1507 = vrot.slane %v1505, 5
        %v1508 = vor.u32 %v1504, %v1507
        %v1509 = vrot.slane %v1508, 4
        %v1511 = vshll.u32 %v1373, 16
        %v1513 = vrot.slane %v1511, 5
        %v1514 = vsel %vm275, %v1509, %v1513
        %v1515 = vshrl.u32 %v1373, 16
        %v1517 = vrot.slane %v1515, 4
        %v1518 = vor.u32 %v1517, %v1513
        %v1519 = vrot.slane %v1518, 4
        %v1521 = vshll.u32 %v1374, 16
        %v1523 = vrot.slane %v1521, 5
        %v1524 = vsel %vm275, %v1519, %v1523
        %v1526 = vshrl.u32 %v1375, 16
        %v1528 = vrot.slane %v1526, 4
        %v1529 = vshll.u32 %v1375, 16
        %v1531 = vrot.slane %v1529, 5
        %v1532 = vor.u32 %v1528, %v1531
        %v1533 = vrot.slane %v1532, 4
        %v1535 = vshll.u32 %v1376, 16
        %v1537 = vrot.slane %v1535, 5
        %v1538 = vsel %vm275, %v1533, %v1537
        %v1539 = vshrl.u32 %v1376, 16
        %v1541 = vrot.slane %v1539, 4
        %v1542 = vor.u32 %v1541, %v1537
        %v1543 = vrot.slane %v1542, 4
        %v1545 = vshll.u32 %v1377, 16
        %v1547 = vrot.slane %v1545, 5
        %v1548 = vsel %vm275, %v1543, %v1547
        %v1550 = vshrl.u32 %v1378, 16
        %v1552 = vrot.slane %v1550, 4
        %v1553 = vshll.u32 %v1378, 16
        %v1555 = vrot.slane %v1553, 5
        %v1556 = vor.u32 %v1552, %v1555
        %v1557 = vrot.slane %v1556, 4
        %v1559 = vshll.u32 %v1379, 16
        %v1561 = vrot.slane %v1559, 5
        %v1562 = vsel %vm275, %v1557, %v1561
        %v1563 = vshrl.u32 %v1379, 16
        %v1565 = vrot.slane %v1563, 4
        %v1566 = vor.u32 %v1565, %v1561
        %v1567 = vrot.slane %v1566, 4
        %v1569 = vshll.u32 %v1380, 16
        %v1571 = vrot.slane %v1569, 5
        %v1572 = vsel %vm275, %v1567, %v1571
        %1573 = vrot.lane.b32.xlu0 %v1394, 28
        %v1574 = vpop.permute.xlu0 %1573
        %1575 = vrot.lane.b32.xlu0 %v1404, 28
        %v1576 = vpop.permute.xlu0 %1575
        %1577 = vrot.lane.b32.xlu0 %v1418, 28
        %v1578 = vpop.permute.xlu0 %1577
        %1579 = vrot.lane.b32.xlu0 %v1428, 28
        %v1580 = vpop.permute.xlu0 %1579
        %1581 = vrot.lane.b32.xlu0 %v1442, 28
        %v1582 = vpop.permute.xlu0 %1581
        %1583 = vrot.lane.b32.xlu0 %v1452, 28
        %v1584 = vpop.permute.xlu0 %1583
        %1585 = vrot.lane.b32.xlu0 %v1466, 28
        %v1586 = vpop.permute.xlu0 %1585
        %1587 = vrot.lane.b32.xlu0 %v1476, 28
        %v1588 = vpop.permute.xlu0 %1587
        %1589 = vrot.lane.b32.xlu0 %v1490, 28
        %v1590 = vpop.permute.xlu0 %1589
        %1591 = vrot.lane.b32.xlu0 %v1500, 28
        %v1592 = vpop.permute.xlu0 %1591
        %1593 = vrot.lane.b32.xlu0 %v1514, 28
        %v1594 = vpop.permute.xlu0 %1593
        %1595 = vrot.lane.b32.xlu0 %v1524, 28
        %v1596 = vpop.permute.xlu0 %1595
        %1597 = vrot.lane.b32.xlu0 %v1538, 28
        %v1598 = vpop.permute.xlu0 %1597
        %1599 = vrot.lane.b32.xlu0 %v1548, 28
        %v1600 = vpop.permute.xlu0 %1599
        %1601 = vrot.lane.b32.xlu0 %v1562, 28
        %v1602 = vpop.permute.xlu0 %1601
        %1603 = vrot.lane.b32.xlu0 %v1572, 28
        %v1604 = vpop.permute.xlu0 %1603
        %vm1621 = vcmask 257248
        %1622 = vst.msk [vmem:[#allocation2] sm:$0xf] %vm1621, %v1574
        %1623 = vst.msk [vmem:[#allocation2 + $0x4] sm:$0xf] %vm1621, %v1576
        %1624 = vst.msk [vmem:[#allocation2 + $0x8] sm:$0xf] %vm1621, %v1578
        %1625 = vst.msk [vmem:[#allocation2 + $0xc] sm:$0xf] %vm1621, %v1580
        %1626 = vst.msk [vmem:[#allocation2 + $0x10] sm:$0xf] %vm1621, %v1582
        %1627 = vst.msk [vmem:[#allocation2 + $0x14] sm:$0xf] %vm1621, %v1584
        %1628 = vst.msk [vmem:[#allocation2 + $0x18] sm:$0xf] %vm1621, %v1586
        %1629 = vst.msk [vmem:[#allocation2 + $0x1c] sm:$0xf] %vm1621, %v1588
        %1630 = vst.msk [vmem:[#allocation2 + $0x20] sm:$0xf] %vm1621, %v1590
        %1631 = vst.msk [vmem:[#allocation2 + $0x24] sm:$0xf] %vm1621, %v1592
        %1632 = vst.msk [vmem:[#allocation2 + $0x28] sm:$0xf] %vm1621, %v1594
        %1633 = vst.msk [vmem:[#allocation2 + $0x2c] sm:$0xf] %vm1621, %v1596
        %1634 = vst.msk [vmem:[#allocation2 + $0x30] sm:$0xf] %vm1621, %v1598
        %1635 = vst.msk [vmem:[#allocation2 + $0x34] sm:$0xf] %vm1621, %v1600
        %1636 = vst.msk [vmem:[#allocation2 + $0x38] sm:$0xf] %vm1621, %v1602
        %1637 = vst.msk [vmem:[#allocation2 + $0x3c] sm:$0xf] %vm1621, %v1604
        %v1638 = vld [vmem:[%s1259] sm:$0xe]
        %v1639 = vld [vmem:[%s1259 + $0x4] sm:$0xf]
        %v1640 = vld [vmem:[%s1259 + $0x8] sm:$0x1]
        %v1641 = vld [vmem:[%s1259 + $0xc] sm:$0xe]
        %v1642 = vld [vmem:[%s1259 + $0x10] sm:$0xf]
        %v1643 = vld [vmem:[%s1259 + $0x14] sm:$0x1]
        %v1644 = vld [vmem:[%s1259 + $0x18] sm:$0xe]
        %v1645 = vld [vmem:[%s1259 + $0x1c] sm:$0xf]
        %v1646 = vld [vmem:[%s1259 + $0x20] sm:$0x1]
        %v1647 = vld [vmem:[%s1259 + $0x24] sm:$0xe]
        %v1648 = vld [vmem:[%s1259 + $0x28] sm:$0xf]
        %v1649 = vld [vmem:[%s1259 + $0x2c] sm:$0x1]
        %v1650 = vld [vmem:[%s1259 + $0x30] sm:$0xe]
        %v1651 = vld [vmem:[%s1259 + $0x34] sm:$0xf]
        %v1652 = vld [vmem:[%s1259 + $0x38] sm:$0x1]
        %v1653 = vld [vmem:[%s1259 + $0x3c] sm:$0xe]
        %v1654 = vld [vmem:[%s1259 + $0x40] sm:$0xf]
        %v1655 = vld [vmem:[%s1259 + $0x44] sm:$0x1]
        %v1656 = vld [vmem:[%s1259 + $0x48] sm:$0xe]
        %v1657 = vld [vmem:[%s1259 + $0x4c] sm:$0xf]
        %v1658 = vld [vmem:[%s1259 + $0x50] sm:$0x1]
        %v1659 = vld [vmem:[%s1259 + $0x54] sm:$0xe]
        %v1660 = vld [vmem:[%s1259 + $0x58] sm:$0xf]
        %v1661 = vld [vmem:[%s1259 + $0x5c] sm:$0x1]
        %v1686 = vrot.slane %v1638, 5
        %v1687 = vrot.slane %v1686, 4
        %v1688 = vrot.slane %v1639, 5
        %v1689 = vsel %vm583, %v1687, %v1688
        %v1690 = vrot.slane %v1688, 4
        %v1691 = vrot.slane %v1640, 5
        %v1692 = vsel %vm583, %v1690, %v1691
        %v1693 = vrot.slane %v1641, 5
        %v1694 = vrot.slane %v1693, 4
        %v1695 = vrot.slane %v1642, 5
        %v1696 = vsel %vm583, %v1694, %v1695
        %v1697 = vrot.slane %v1695, 4
        %v1698 = vrot.slane %v1643, 5
        %v1699 = vsel %vm583, %v1697, %v1698
        %v1700 = vrot.slane %v1644, 5
        %v1701 = vrot.slane %v1700, 4
        %v1702 = vrot.slane %v1645, 5
        %v1703 = vsel %vm583, %v1701, %v1702
        %v1704 = vrot.slane %v1702, 4
        %v1705 = vrot.slane %v1646, 5
        %v1706 = vsel %vm583, %v1704, %v1705
        %v1707 = vrot.slane %v1647, 5
        %v1708 = vrot.slane %v1707, 4
        %v1709 = vrot.slane %v1648, 5
        %v1710 = vsel %vm583, %v1708, %v1709
        %v1711 = vrot.slane %v1709, 4
        %v1712 = vrot.slane %v1649, 5
        %v1713 = vsel %vm583, %v1711, %v1712
        %v1714 = vrot.slane %v1650, 5
        %v1715 = vrot.slane %v1714, 4
        %v1716 = vrot.slane %v1651, 5
        %v1717 = vsel %vm583, %v1715, %v1716
        %v1718 = vrot.slane %v1716, 4
        %v1719 = vrot.slane %v1652, 5
        %v1720 = vsel %vm583, %v1718, %v1719
        %v1721 = vrot.slane %v1653, 5
        %v1722 = vrot.slane %v1721, 4
        %v1723 = vrot.slane %v1654, 5
        %v1724 = vsel %vm583, %v1722, %v1723
        %v1725 = vrot.slane %v1723, 4
        %v1726 = vrot.slane %v1655, 5
        %v1727 = vsel %vm583, %v1725, %v1726
        %v1728 = vrot.slane %v1656, 5
        %v1729 = vrot.slane %v1728, 4
        %v1730 = vrot.slane %v1657, 5
        %v1731 = vsel %vm583, %v1729, %v1730
        %v1732 = vrot.slane %v1730, 4
        %v1733 = vrot.slane %v1658, 5
        %v1734 = vsel %vm583, %v1732, %v1733
        %v1735 = vrot.slane %v1659, 5
        %v1736 = vrot.slane %v1735, 4
        %v1737 = vrot.slane %v1660, 5
        %v1738 = vsel %vm583, %v1736, %v1737
        %v1739 = vrot.slane %v1737, 4
        %v1740 = vrot.slane %v1661, 5
        %v1741 = vsel %vm583, %v1739, %v1740
        %1742 = vrot.lane.b32.xlu0 %v1689, 32
        %v1743 = vpop.permute.xlu0 %1742
        %1744 = vrot.lane.b32.xlu0 %v1692, 32
        %v1745 = vpop.permute.xlu0 %1744
        %1746 = vrot.lane.b32.xlu0 %v1696, 32
        %v1747 = vpop.permute.xlu0 %1746
        %1748 = vrot.lane.b32.xlu0 %v1699, 32
        %v1749 = vpop.permute.xlu0 %1748
        %1750 = vrot.lane.b32.xlu0 %v1703, 32
        %v1751 = vpop.permute.xlu0 %1750
        %1752 = vrot.lane.b32.xlu0 %v1706, 32
        %v1753 = vpop.permute.xlu0 %1752
        %1754 = vrot.lane.b32.xlu0 %v1710, 32
        %v1755 = vpop.permute.xlu0 %1754
        %1756 = vrot.lane.b32.xlu0 %v1713, 32
        %v1757 = vpop.permute.xlu0 %1756
        %1758 = vrot.lane.b32.xlu0 %v1717, 32
        %v1759 = vpop.permute.xlu0 %1758
        %1760 = vrot.lane.b32.xlu0 %v1720, 32
        %v1761 = vpop.permute.xlu0 %1760
        %1762 = vrot.lane.b32.xlu0 %v1724, 32
        %v1763 = vpop.permute.xlu0 %1762
        %1764 = vrot.lane.b32.xlu0 %v1727, 32
        %v1765 = vpop.permute.xlu0 %1764
        %1766 = vrot.lane.b32.xlu0 %v1731, 32
        %v1767 = vpop.permute.xlu0 %1766
        %1768 = vrot.lane.b32.xlu0 %v1734, 32
        %v1769 = vpop.permute.xlu0 %1768
        %1770 = vrot.lane.b32.xlu0 %v1738, 32
        %v1771 = vpop.permute.xlu0 %1770
        %1772 = vrot.lane.b32.xlu0 %v1741, 32
        %v1773 = vpop.permute.xlu0 %1772
        %vm1790 = vcmask 290048
        %1791 = vst.msk [vmem:[#allocation2] sm:$0xf] %vm1790, %v1743
        %1792 = vst.msk [vmem:[#allocation2 + $0x4] sm:$0xf] %vm1790, %v1745
        %1793 = vst.msk [vmem:[#allocation2 + $0x8] sm:$0xf] %vm1790, %v1747
        %1794 = vst.msk [vmem:[#allocation2 + $0xc] sm:$0xf] %vm1790, %v1749
        %1795 = vst.msk [vmem:[#allocation2 + $0x10] sm:$0xf] %vm1790, %v1751
        %1796 = vst.msk [vmem:[#allocation2 + $0x14] sm:$0xf] %vm1790, %v1753
        %1797 = vst.msk [vmem:[#allocation2 + $0x18] sm:$0xf] %vm1790, %v1755
        %1798 = vst.msk [vmem:[#allocation2 + $0x1c] sm:$0xf] %vm1790, %v1757
        %1799 = vst.msk [vmem:[#allocation2 + $0x20] sm:$0xf] %vm1790, %v1759
        %1800 = vst.msk [vmem:[#allocation2 + $0x24] sm:$0xf] %vm1790, %v1761
        %1801 = vst.msk [vmem:[#allocation2 + $0x28] sm:$0xf] %vm1790, %v1763
        %1802 = vst.msk [vmem:[#allocation2 + $0x2c] sm:$0xf] %vm1790, %v1765
        %1803 = vst.msk [vmem:[#allocation2 + $0x30] sm:$0xf] %vm1790, %v1767
        %1804 = vst.msk [vmem:[#allocation2 + $0x34] sm:$0xf] %vm1790, %v1769
        %1805 = vst.msk [vmem:[#allocation2 + $0x38] sm:$0xf] %vm1790, %v1771
        %1806 = vst.msk [vmem:[#allocation2 + $0x3c] sm:$0xf] %vm1790, %v1773
        loop: start=0, step=1, limit=8
        $region37: #{tpu_custom_call.1} parent=35 // loop_pre_header
          _
        $region38: #{tpu_custom_call.1} parent=35 // loop_header
          %s1808 = sphi 0, %s1812
          %p1809 = scmp.ge.s32.totalorder %s1808, 8
        $region39: #{tpu_custom_call.1} parent=35 // loop_header_branch
          %1811 = sbr.rel (%p1809) target = $region43
        $region40: #{tpu_custom_call.1} parent=35 // loop_body
          %s1813 = smul.u32 %s1808, 2
          %s1814 = smul.addr %s1813, 4
          %s1815 = scalar_lea.vmem [#allocation2], %s1814
          %v1816 = vld [vmem:[%s1815] sm:$0xf]
          %v1817 = vld [vmem:[%s1815 + $0x4] sm:$0xf]
          %v1818 = vld [vmem:[%s1] sm:$0xf]
          %v1819 = vld [vmem:[%s1 + $0x4] sm:$0xf]
          %v1820 = vld [vmem:[%s1 + $0x8] sm:$0xf]
          %v1821 = vld [vmem:[%s1 + $0xc] sm:$0xf]
          %v1822 = vld [vmem:[%s1 + $0x10] sm:$0x3]
          %v1825 = vunpack.c.l.b16 %v1816
          %v1826 = vunpack.c.l.b16 %v1817
          %v1827 = vpack.c.b16 %v1826, %v1825
          %v1833 = vunpack.c.l.b16 %v1818
          %v1834 = vunpack.c.l.b16 %v1819
          %v1835 = vunpack.c.l.b16 %v1820
          %v1836 = vunpack.c.l.b16 %v1821
          %v1837 = vunpack.c.l.b16 %v1822
          %v1838 = vpack.c.b16 %v1834, %v1833
          %v1839 = vpack.c.b16 %v1836, %v1835
          %v1840 = vpack.c.b16 %v1837, %v1837
          %vm1843 = vcmask 293888
          %v1845 = vsel %vm1843, %v1827, 0
          %vm1847 = vcmask 1041408
          %v1849 = vsel %vm1847, %v1840, 0
          %1851 = vmatprep.subr.bf16.mxu0 0
          %1852 = vmatpush1.bf16.msra.mxu0 0
          %1853 = vmatprep.subr.bf16.mxu0 0
          %1854 = vmatpush1.bf16.msra.mxu0 0
          %1855 = vmatprep.subr.bf16.mxu0 0
          %1856 = vmatpush1.bf16.msra.mxu0 0
          %1857 = vmatprep.subr.bf16.mxu0 0
          %1858 = vmatpush1.bf16.msra.mxu0 0
          %1859 = vmatprep.subr.bf16.mxu0 0
          %1860 = vmatpush1.bf16.msra.mxu0 0
          %1861 = vmatprep.subr.bf16.mxu0 0
          %1862 = vmatpush1.bf16.msra.mxu0 %v1849
          %1863 = vmatprep.subr.bf16.mxu0 0
          %1864 = vmatpush1.bf16.msra.mxu0 %v1839
          %1865 = vmatprep.subr.bf16.mxu0 0
          %1866 = vmatpush1.bf16.msra.mxu0 %v1838
          %1867 = vmatprep.subr.bf16.mxu0 0
          %1868 = vmatpush2.bf16.msra.mxu0 0
          %1869 = vmatprep.subr.bf16.mxu0 0
          %1870 = vmatpush2.bf16.msra.mxu0 0
          %1871 = vmatprep.subr.bf16.mxu0 0
          %1872 = vmatpush2.bf16.msra.mxu0 0
          %1873 = vmatprep.subr.bf16.mxu0 0
          %1874 = vmatpush2.bf16.msra.mxu0 0
          %1875 = vmatprep.subr.bf16.mxu0 0
          %1876 = vmatpush2.bf16.msra.mxu0 0
          %1877 = vmatprep.subr.bf16.mxu0 0
          %1878 = vmatpush2.bf16.msra.mxu0 0
          %1879 = vmatprep.subr.bf16.mxu0 0
          %1880 = vmatpush2.bf16.msra.mxu0 0
          %1881 = vmatprep.subr.bf16.mxu0 0
          %1882 = vmatpush2.bf16.msra.mxu0 0
          %1883 = vmatprep.mubr.bf16.mxu0 0
          %1884 = vmatmul.mubr.bf16.gmra.mxu0 %v1845
          %v1885 = vpop.f32.mrf.mxu0
          %v1886 = vadd.f32 0.0, %v1885
          %v1887 = vpop.f32.mrf.mxu0
          %v1888 = vpop.f32.mrf.mxu0
          %v1889 = vadd.f32 0.0, %v1888
          %v1890 = vpop.f32.mrf.mxu0
          %1891 = vdwg.mxu0
          %v1892 = vld [vmem:[%s2] sm:$0x1]
          %v1894 = vlaneseq
          %v1895 = vshrl.u32 %v1894, 7
          %v1896 = vsub.s32 0, %v1895
          %v1897 = vrot.slane %v1892, %v1896
          %v1899 = vmul.f32 %v1886, %v1897
          %v1900 = vmul.f32 %v1889, %v1897
          %v1901 = vld [vmem:[%s3] sm:$0x1]
          %v1903 = vlaneseq
          %v1904 = vshrl.u32 %v1903, 7
          %v1905 = vsub.s32 0, %v1904
          %v1906 = vrot.slane %v1901, %v1905
          %v1908 = vadd.f32 %v1899, %v1906
          %v1909 = vadd.f32 %v1900, %v1906
          %v1910 = vxor.u32 %v1908, 2147483648
          %v1911 = vxor.u32 %v1909, 2147483648
          %v1912 = vmul.f32 %v1910, 1.442695
          %v1913 = vpow.pop %v1912
          %v1914 = vmul.f32 %v1911, 1.442695
          %v1915 = vpow.pop %v1914
          %v1916 = vadd.f32 %v1913, 1.0
          %v1917 = vadd.f32 %v1915, 1.0
          %v1918 = vrcp.pop %v1916
          %v1919 = vmul.f32 1.0, %v1918
          %v1920 = vrcp.pop %v1917
          %v1921 = vmul.f32 1.0, %v1920
          %v1922 = vmul.f32 %v1908, %v1919
          %v1923 = vmul.f32 %v1909, %v1921
          %v1924 = vpack.c.bf16 %v1923, %v1922
          %v1926 = vunpack.c.l.b16 %v1924
          %v1927 = vunpack.c.h.b16 %v1924
          %v1928 = vpack.c.b16 %v1926, %v1926
          %v1929 = vpack.c.b16 %v1927, %v1927
          %s1932 = smul.addr %s1813, 4
          %s1933 = scalar_lea.vmem %s204, %s1932 [#allocation3]
          %vm1934 = vcmask 257024
          %1935 = vst.msk [vmem:[%s1933] sm:$0xf] %vm1934, %v1928
          %1936 = vst.msk [vmem:[%s1933 + $0x4] sm:$0xf] %vm1934, %v1929
        $region41: #{tpu_custom_call.1} parent=35 // loop_footer
          %s1812 = sadd.s32 1, %s1808
        $region42: #{tpu_custom_call.1} parent=35 // loop_footer_branch
          %1807 = sbr.rel target = $region38
        $region43: #{tpu_custom_call.1} parent=35 // loop_exit
          _
        %s1937 = sand.u32 %s129, 1
        %s1938 = scalar_lea.sflag [#allocation4], %s1937
        %s1939 = sand.u32 %s129, 1
        %s1940 = smul.addr %s1939, 64
        %s1941 = scalar_lea.vmem [#allocation3], %s1940
        // Predicated region
        $region44: #{tpu_custom_call.1} parent=35 // pred_check
          %p1942 = pneg %p139
        $region45: #{tpu_custom_call.1} parent=35 // pred_check_branch
          %1944 = sbr.rel (%p1942) target = $region47
        $region46: #{tpu_custom_call.1} parent=35 // pred_region
          %s1945 = smul.u32 8, %s23
          %s1947 = ssub.s32 1024, 1024
          %1948 = vsyncadd %s1938, %s1947
          %s1949 = smul.addr %s1945, 2
          %s1950 = smul.addr %s22, 32
          %s1951 = sadd.s32 %s1949, %s1950
          %s1952 = smul.addr %s1951, 64
          %s1953 = scalar_lea.hbm %s4, %s1952
          %s1954 = sshll.u32 %s1941, 4
          %s1955 = int_to_ptr.vmem [resolvable:$true] %s1954
          %1960 = dma.vmem_to_hbm [thread:$0]  %s1955, 1024, %s1953, %s1938, 64, 64, 4
        $region47: #{tpu_custom_call.1} parent=35 // pred_fallthru
          _
      $region36: #{tpu_custom_call.1} parent=5 // pred_fallthru
        _
      %p1961 = scmp.le.s32.totalorder 2, %s13
      // Predicated region
      $region48: #{tpu_custom_call.1} parent=5 // pred_check
        %p1962 = pneg %p1961
      $region49: #{tpu_custom_call.1} parent=5 // pred_check_branch
        %1964 = sbr.rel (%p1962) target = $region51
      $region50: #{tpu_custom_call.1} parent=5 // pred_region
        %s1965 = ssub.s32 %s13, 2
        // Predicated region
        $region52: #{tpu_custom_call.1} parent=50 // pred_check
          %p1966 = pneg %p145
        $region53: #{tpu_custom_call.1} parent=50 // pred_check_branch
          %1968 = sbr.rel (%p1966) target = $region55
        $region54: #{tpu_custom_call.1} parent=50 // pred_region
          %s1969 = sand.u32 %s130, 1
          %s1970 = scalar_lea.sflag [#allocation4], %s1969
          %s1971 = sand.u32 %s130, 1
          %s1972 = smul.addr %s1971, 64
          %s1973 = scalar_lea.vmem [#allocation3], %s1972
          %1974 = dma.done %s1970, 1024
        $region55: #{tpu_custom_call.1} parent=50 // pred_fallthru
          _
      $region51: #{tpu_custom_call.1} parent=5 // pred_fallthru
        _
    $region6: #{tpu_custom_call.1} parent=1 // loop_footer
      %s17 = sadd.s32 1, %s13
    $region7: #{tpu_custom_call.1} parent=1 // loop_footer_branch
      %12 = sbr.rel target = $region3
    $region8: #{tpu_custom_call.1} parent=1 // loop_exit
      _
    %1975 = vsyncpa [#allocation4], 1
    %s1976 = scalar_lea.sflag [#allocation4], 1
    %1977 = vsyncpa %s1976, 1

</llo_original>
